<compile_context>
chip_gen: v6e
topology: v6e:2x2x1
jax: 0.10.0
libtpu: 0.0.40
codegen_flags: <defaults>
</compile_context>

<pallas_src>
import functools

import jax
import jax.numpy as jnp
from jax.experimental import pallas as pl
from jax.experimental.pallas import tpu as pltpu


def _round_up(x, m):
    return ((x + m - 1) // m) * m


def edge_decoder_kernel(row_ref, col_ref, zu_ref, zr_ref, mt_ref, o_ref, *,
                        precision):
    """Scores one tile of edges, gathering node rows in-kernel.

    row_ref, col_ref : (1, tE)        int32 node ids for this tile (lane dense)
    zu_ref           : (Ha, Nu_pad)   augmented, transposed user table [z_u^T; 1; 0]
    zr_ref           : (Ha, Nr_pad)   augmented, transposed restaurant table
    mt_ref           : (Ha, Ha)       M'^T -- folded augmented bilinear form (f32)
    o_ref            : (1, tE)        per-edge scores, lane dense
    """
    row = row_ref[...]                                   # (1, tE) int32
    col = col_ref[...]
    n_u = zu_ref.shape[1]
    n_r = zr_ref.shape[1]
    t_e = row.shape[1]

    # One-hot gather masks: sublane axis = node id, lane axis = edge (VPU).
    oh_u = (jax.lax.broadcasted_iota(jnp.int32, (n_u, t_e), 0) == row)
    oh_r = (jax.lax.broadcasted_iota(jnp.int32, (n_r, t_e), 0) == col)
    oh_u = oh_u.astype(zu_ref.dtype)
    oh_r = oh_r.astype(zr_ref.dtype)

    # MXU gather: augmented slabs with the edge axis on lanes.
    u_t = jnp.dot(zu_ref[...], oh_u, preferred_element_type=jnp.float32,
                  precision=precision)                   # (Ha, tE)
    r_t = jnp.dot(zr_ref[...], oh_r, preferred_element_type=jnp.float32,
                  precision=precision)                   # (Ha, tE)

    # Augmented bilinear form: score_e = u'^T M' r'.  Both Linear biases and
    # the bu.br constant ride in the augmentation row/column -- no broadcast
    # epilogue, no wrapper '+ c'.
    p = jnp.dot(mt_ref[...], u_t, preferred_element_type=jnp.float32,
                precision=precision)                     # (Ha, tE)

    # Sublane reduction over Ha -> lane-dense (1, tE) row (full-width store).
    o_ref[...] = jnp.sum(p * r_t, axis=0, keepdims=True)


def edge_decoder(z_user, z_rest, edge_label_index, params, *,
                 tile_e=4096, table_dtype=jnp.float32):
    """z_user: [N_u, H], z_rest: [N_r, H], edge_label_index: [2, E] -> [E]."""
    wu, bu, wr, br = params          # wu/wr: [H_in, H_out] (x @ W layout), bu/br: [H]
    n_u, h = z_user.shape
    n_r, _ = z_rest.shape
    row = edge_label_index[0].astype(jnp.int32)
    col = edge_label_index[1].astype(jnp.int32)
    e = row.shape[0]
    if e == 0:                       # degenerate (empty grid) case
        return jnp.zeros((0,), jnp.float32)

    highest = jax.lax.Precision.HIGHEST

    # --- fold both Linears + biases into ONE augmented bilinear form --------
    #   (u Wu + bu).(r Wr + br) = [u,1] M' [r,1]^T
    #   M' = [[Wu Wr^T, Wu br], [(Wr bu)^T, bu.br]]
    # O(H^3) wrapper-side work; contracted dim padded to a sublane multiple.
    ha = _round_up(h + 1, 8)
    m_aug = jnp.zeros((ha, ha), jnp.float32)
    m_aug = m_aug.at[:h, :h].set(jnp.dot(wu, wr.T, precision=highest))
    m_aug = m_aug.at[:h, h].set(jnp.dot(wu, br, precision=highest))
    m_aug = m_aug.at[h, :h].set(jnp.dot(wr, bu, precision=highest))
    m_aug = m_aug.at[h, h].set(jnp.dot(bu, br, precision=highest))
    mt = m_aug.T                     # kernel computes (M'^T u') . r'

    # --- augmented, transposed node tables (VMEM resident inside the kernel) -
    n_u_pad = _round_up(n_u, 8)
    n_r_pad = _round_up(n_r, 8)

    def _table(z, n_pad):
        zt = jnp.zeros((ha, n_pad), jnp.float32)
        zt = zt.at[:h, : z.shape[0]].set(z.T)
        zt = zt.at[h, : z.shape[0]].set(1.0)        # augmentation row of ones
        return zt.astype(table_dtype)

    zu_t = _table(z_user, n_u_pad)
    zr_t = _table(z_rest, n_r_pad)

    # --- edge tiling: lane aligned, big enough to amortise step overhead ----
    assert tile_e % 128 == 0, "tile_e must be a multiple of 128 (lane width)"
    tile_e = int(min(tile_e, max(128, _round_up(e, 128))))
    e_pad = _round_up(e, tile_e)
    row_p = jnp.pad(row, (0, e_pad - e)).reshape(1, e_pad)   # padded tail -> node 0,
    col_p = jnp.pad(col, (0, e_pad - e)).reshape(1, e_pad)   # scores sliced off below

    # Precision policy (see header note 4).
    if table_dtype == jnp.bfloat16:
        precision = jax.lax.Precision.DEFAULT    # native single-pass bf16 MXU
    else:
        precision = highest                      # module-parity f32 path

    kernel = functools.partial(edge_decoder_kernel, precision=precision)

    itemsize = jnp.dtype(table_dtype).itemsize
    cost = pl.CostEstimate(
        flops=(2 * ha * (n_u_pad + n_r_pad) + 2 * ha * ha + 3 * ha) * e_pad,
        transcendentals=0,
        bytes_accessed=(3 * e_pad * 4                        # row, col, scores
                        + (n_u_pad + n_r_pad) * ha * itemsize
                        + ha * ha * 4),
    )

    grid = (e_pad // tile_e,)
    out = pl.pallas_call(
        kernel,
        out_shape=jax.ShapeDtypeStruct((1, e_pad), jnp.float32),
        grid_spec=pltpu.PrefetchScalarGridSpec(
            num_scalar_prefetch=0,
            grid=grid,
            in_specs=[
                # Streamed per tile (lane dense): only 12 B of HBM per edge.
                pl.BlockSpec((1, tile_e), lambda i: (0, i)),     # user indices
                pl.BlockSpec((1, tile_e), lambda i: (0, i)),     # restaurant indices
                # Grid-invariant blocks (constant index_map -> fetched once).
                pl.BlockSpec((ha, n_u_pad), lambda i: (0, 0)),   # user table
                pl.BlockSpec((ha, n_r_pad), lambda i: (0, 0)),   # restaurant table
                pl.BlockSpec((ha, ha), lambda i: (0, 0)),        # M'^T
            ],
            out_specs=pl.BlockSpec((1, tile_e), lambda i: (0, i)),
        ),
        compiler_params=pltpu.CompilerParams(
            dimension_semantics=("parallel",)),
        cost_estimate=cost,
    )(row_p, col_p, zu_t, zr_t, mt)

    return out[0, :e]                # [E]


def reference(z_user, z_rest, edge_label_index, params):
    wu, bu, wr, br = params
    row, col = edge_label_index[0], edge_label_index[1]
    highest = jax.lax.Precision.HIGHEST
    u = jnp.dot(z_user[row], wu, precision=highest) + bu
    r = jnp.dot(z_rest[col], wr, precision=highest) + br
    return jnp.sum(u * r, axis=-1)


if __name__ == "__main__":
    key = jax.random.PRNGKey(0)
    H = 32          # hidden_channels
    N_user = 12
    N_rest = 10
    E = 16          # number of edges

    k1, k2, k3, k4, k5, k6, k7, k8 = jax.random.split(key, 8)

    z_user = jax.random.normal(k1, (N_user, H), dtype=jnp.float32)
    z_rest = jax.random.normal(k2, (N_rest, H), dtype=jnp.float32)
    row = jax.random.randint(k3, (E,), 0, N_user, dtype=jnp.int32)
    col = jax.random.randint(k4, (E,), 0, N_rest, dtype=jnp.int32)
    edge_label_index = jnp.stack([row, col], axis=0)  # [2, E]

    # Deterministic Linear(H, H)-style params in the transposed [in, out]
    # layout so the math is x @ W + b.
    scale = 1.0 / jnp.sqrt(jnp.float32(H))
    wu = jax.random.uniform(k5, (H, H), jnp.float32, -scale, scale)
    bu = jax.random.uniform(k6, (H,), jnp.float32, -scale, scale)
    wr = jax.random.uniform(k7, (H, H), jnp.float32, -scale, scale)
    br = jax.random.uniform(k8, (H,), jnp.float32, -scale, scale)
    params = (wu, bu, wr, br)

    ref = reference(z_user, z_rest, edge_label_index, params)

    # f32 activation path (default; module-exact numerics, tight check).
    out = jax.block_until_ready(
        edge_decoder(z_user, z_rest, edge_label_index, params))
    assert out.shape == (E,), out.shape
    assert jnp.allclose(out, ref, atol=1e-3, rtol=1e-3), (
        float(jnp.max(jnp.abs(out - ref))))

    # bf16 activation path (v6e/v7x deployment config from the perf review):
    # halves table bytes / VMEM; only the bf16 rounding of z differs from f32,
    # so a looser tolerance applies.
    out_bf16 = jax.block_until_ready(
        edge_decoder(z_user, z_rest, edge_label_index, params,
                     table_dtype=jnp.bfloat16))
    assert jnp.allclose(out_bf16, ref, atol=2e-2, rtol=2e-2), (
        float(jnp.max(jnp.abs(out_bf16 - ref))))

    print("KERNEL_OK")
</pallas_src>

<mosaic_0001>
module attributes {stable_mosaic.version = 11 : i64} {
  func.func @edge_decoder_kernel(%arg0: i32, %arg1: memref<1x128xi32, #tpu.memory_space<vmem>>, %arg2: memref<1x128xi32, #tpu.memory_space<vmem>>, %arg3: memref<40x16xf32, #tpu.memory_space<vmem>>, %arg4: memref<40x16xf32, #tpu.memory_space<vmem>>, %arg5: memref<40x40xf32, #tpu.memory_space<vmem>>, %arg6: memref<1x128xf32, #tpu.memory_space<vmem>>) attributes {dimension_semantics = [#tpu.dimension_semantics<parallel>], iteration_bounds = array<i64: 1>, scalar_prefetch = 0 : i64, scratch_operands = 0 : i64, tpu.core_type = #tpu.core_type<tc>, window_params = [{transform_indices = @transform_0, window_bounds = array<i64: 1, 128>}, {transform_indices = @transform_1, window_bounds = array<i64: 1, 128>}, {pipeline_mode = #tpu.pipeline_mode<synchronous>, transform_indices = @transform_2, window_bounds = array<i64: 40, 16>}, {pipeline_mode = #tpu.pipeline_mode<synchronous>, transform_indices = @transform_3, window_bounds = array<i64: 40, 16>}, {pipeline_mode = #tpu.pipeline_mode<synchronous>, transform_indices = @transform_4, window_bounds = array<i64: 40, 40>}, {transform_indices = @transform_5, window_bounds = array<i64: 1, 128>}]} {
    %c0 = arith.constant 0 : index
    %c0_0 = arith.constant 0 : index
    %0 = vector.load %arg1[%c0, %c0_0] : memref<1x128xi32, #tpu.memory_space<vmem>>, vector<1x128xi32>
    %c0_1 = arith.constant 0 : index
    %c0_2 = arith.constant 0 : index
    %1 = vector.load %arg2[%c0_1, %c0_2] : memref<1x128xi32, #tpu.memory_space<vmem>>, vector<1x128xi32>
    %2 = tpu.iota {dimensions = array<i32: 0>} : vector<16x128xi32>
    %3 = vector.broadcast %0 : vector<1x128xi32> to vector<16x128xi32>
    %4 = arith.cmpi eq, %2, %3 : vector<16x128xi32>
    %5 = tpu.iota {dimensions = array<i32: 0>} : vector<16x128xi32>
    %6 = vector.broadcast %1 : vector<1x128xi32> to vector<16x128xi32>
    %7 = arith.cmpi eq, %5, %6 : vector<16x128xi32>
    %8 = arith.extui %4 : vector<16x128xi1> to vector<16x128xi32>
    %9 = arith.sitofp %8 : vector<16x128xi32> to vector<16x128xf32>
    %10 = arith.extui %7 : vector<16x128xi1> to vector<16x128xi32>
    %11 = arith.sitofp %10 : vector<16x128xi32> to vector<16x128xf32>
    %c0_3 = arith.constant 0 : index
    %c0_4 = arith.constant 0 : index
    %12 = vector.load %arg3[%c0_3, %c0_4] : memref<40x16xf32, #tpu.memory_space<vmem>>, vector<40x16xf32>
    %cst = arith.constant dense<0.000000e+00> : vector<40x128xf32>
    %13 = tpu.matmul %12, %9, %cst {dimension_numbers = #tpu.dot_dimension_numbers<[1], [0], [0], [1], [0, 0, 1, 1], [], []>, precision = #tpu.contract_precision<fp32>} : vector<40x16xf32>, vector<16x128xf32>, vector<40x128xf32> -> vector<40x128xf32>
    %c0_5 = arith.constant 0 : index
    %c0_6 = arith.constant 0 : index
    %14 = vector.load %arg4[%c0_5, %c0_6] : memref<40x16xf32, #tpu.memory_space<vmem>>, vector<40x16xf32>
    %cst_7 = arith.constant dense<0.000000e+00> : vector<40x128xf32>
    %15 = tpu.matmul %14, %11, %cst_7 {dimension_numbers = #tpu.dot_dimension_numbers<[1], [0], [0], [1], [0, 0, 1, 1], [], []>, precision = #tpu.contract_precision<fp32>} : vector<40x16xf32>, vector<16x128xf32>, vector<40x128xf32> -> vector<40x128xf32>
    %c0_8 = arith.constant 0 : index
    %c0_9 = arith.constant 0 : index
    %16 = vector.load %arg5[%c0_8, %c0_9] : memref<40x40xf32, #tpu.memory_space<vmem>>, vector<40x40xf32>
    %cst_10 = arith.constant dense<0.000000e+00> : vector<40x128xf32>
    %17 = tpu.matmul %16, %13, %cst_10 {dimension_numbers = #tpu.dot_dimension_numbers<[1], [0], [0], [1], [0, 0, 1, 1], [], []>, precision = #tpu.contract_precision<fp32>} : vector<40x40xf32>, vector<40x128xf32>, vector<40x128xf32> -> vector<40x128xf32>
    %18 = arith.mulf %17, %15 : vector<40x128xf32>
    %cst_11 = arith.constant dense<0.000000e+00> : vector<128xf32>
    %19 = vector.multi_reduction <add>, %18, %cst_11 [0] : vector<40x128xf32> to vector<128xf32>
    %20 = vector.shape_cast %19 : vector<128xf32> to vector<1x128xf32>
    %c0_12 = arith.constant 0 : index
    %c0_13 = arith.constant 0 : index
    %21 = vector.load %arg6[%c0_12, %c0_13] : memref<1x128xf32, #tpu.memory_space<vmem>>, vector<1x128xf32>
    tpu.vector_store %arg6[%c0_12, %c0_13], %20 {strides = array<i32>} : memref<1x128xf32, #tpu.memory_space<vmem>>, vector<1x128xf32>,
    return
  }
  func.func @transform_0(%arg0: i32) -> (i32, i32) {
    %c0_i32 = arith.constant 0 : i32
    %c0_i32_0 = arith.constant 0 : i32
    return %c0_i32, %arg0 : i32, i32
  }
  func.func @transform_1(%arg0: i32) -> (i32, i32) {
    %c0_i32 = arith.constant 0 : i32
    %c0_i32_0 = arith.constant 0 : i32
    return %c0_i32, %arg0 : i32, i32
  }
  func.func @transform_2(%arg0: i32) -> (i32, i32) {
    %c0_i32 = arith.constant 0 : i32
    %c0_i32_0 = arith.constant 0 : i32
    %c0_i32_1 = arith.constant 0 : i32
    return %c0_i32, %c0_i32_0 : i32, i32
  }
  func.func @transform_3(%arg0: i32) -> (i32, i32) {
    %c0_i32 = arith.constant 0 : i32
    %c0_i32_0 = arith.constant 0 : i32
    %c0_i32_1 = arith.constant 0 : i32
    return %c0_i32, %c0_i32_0 : i32, i32
  }
  func.func @transform_4(%arg0: i32) -> (i32, i32) {
    %c0_i32 = arith.constant 0 : i32
    %c0_i32_0 = arith.constant 0 : i32
    %c0_i32_1 = arith.constant 0 : i32
    return %c0_i32, %c0_i32_0 : i32, i32
  }
  func.func @transform_5(%arg0: i32) -> (i32, i32) {
    %c0_i32 = arith.constant 0 : i32
    %c0_i32_0 = arith.constant 0 : i32
    return %c0_i32, %arg0 : i32, i32
  }
}

</mosaic_0001>

<llo_original>
// kernel: tpu_custom_call.1
$region0: #{tpu_custom_call.1}
  #allocation0 [shape = 'u32[]', space=smem, size = 0x4, offset = 0x4, fixed_abs, tag = 'smem constant byte address 0x4 - core index']
  #allocation1 [shape = 'u32[144,128]{1,0:T(1,128)}', space=vmem, size = 0x12000, scoped, tag = 'internal scratch']
  %s0 = inlined_call_operand.vmem [shape: s32[1,128], index: 0, kind: input, shape index: {}]
  %s1 = inlined_call_operand.vmem [shape: s32[1,128], index: 1, kind: input, shape index: {}]
  %s2 = inlined_call_operand.vmem [shape: f32[40,16], index: 2, kind: input, shape index: {}]
  %s3 = inlined_call_operand.vmem [shape: f32[40,16], index: 3, kind: input, shape index: {}]
  %s4 = inlined_call_operand.vmem [shape: f32[40,40], index: 4, kind: input, shape index: {}]
  %s5 = inlined_call_operand.hbm [shape: f32[1,128], index: 5, kind: output, shape index: {}]
  %s6 = sld [smem:[#allocation0]]
  $region30: #{tpu_custom_call.1} parent=0
    _
  %s8 = ssub.s32 1, %s6
  %s9 = scalar_select 0, %s8, %s6
  $region1: #{tpu_custom_call.1} parent=0
    #allocation2 [shape = 'u8[512]{0}', space=vmem, size = 0x400, scoped, tag = 'output window, operand 0, single buffered']
    #allocation3 [shape = 's32[1]{0}', space=sflag, size = 0x4, scoped, tag = 'scoped memory for tpu_custom_call.1']
    %10 = vsyncpa [#allocation3], 0
    // Predicated region
    $region2: #{tpu_custom_call.1} parent=1 // pred_check
      _
    $region3: #{tpu_custom_call.1} parent=1 // pred_check_branch
      %12 = sbr.rel (0) target = $region5
    $region4: #{tpu_custom_call.1} parent=1 // pred_region
      _
    $region5: #{tpu_custom_call.1} parent=1 // pred_fallthru
      _
    // Predicated region
    $region6: #{tpu_custom_call.1} parent=1 // pred_check
      _
    $region7: #{tpu_custom_call.1} parent=1 // pred_check_branch
      %14 = sbr.rel (0) target = $region9
    $region8: #{tpu_custom_call.1} parent=1 // pred_region
      _
    $region9: #{tpu_custom_call.1} parent=1 // pred_fallthru
      _
    // Predicated region
    $region10: #{tpu_custom_call.1} parent=1 // pred_check
      _
    $region11: #{tpu_custom_call.1} parent=1 // pred_check_branch
      %16 = sbr.rel (0) target = $region13
    $region12: #{tpu_custom_call.1} parent=1 // pred_region
      _
    $region13: #{tpu_custom_call.1} parent=1 // pred_fallthru
      _
    // Predicated region
    $region14: #{tpu_custom_call.1} parent=1 // pred_check
      _
    $region15: #{tpu_custom_call.1} parent=1 // pred_check_branch
      %18 = sbr.rel (0) target = $region17
    $region16: #{tpu_custom_call.1} parent=1 // pred_region
      _
    $region17: #{tpu_custom_call.1} parent=1 // pred_fallthru
      _
    // Predicated region
    $region18: #{tpu_custom_call.1} parent=1 // pred_check
      _
    $region19: #{tpu_custom_call.1} parent=1 // pred_check_branch
      %20 = sbr.rel (0) target = $region21
    $region20: #{tpu_custom_call.1} parent=1 // pred_region
      _
    $region21: #{tpu_custom_call.1} parent=1 // pred_fallthru
      _
    %v21 = vld [vmem:[%s0] sm:$0x1]
    %v22 = vld [vmem:[%s1] sm:$0x1]
    %v23 = vlaneseq
    %v24 = vshrl.u32 %v23, 7
    %v25 = vadd.s32 %v24, 8
    %v26 = vlaneseq
    %v27 = vshrl.u32 %v26, 7
    %v28 = vsub.s32 0, %v27
    %v29 = vrot.slane %v21, %v28
    %vm30 = vcmp.eq.s32.totalorder %v24, %v29
    %vm31 = vcmp.eq.s32.totalorder %v25, %v29
    %v32 = vlaneseq
    %v33 = vshrl.u32 %v32, 7
    %v34 = vsub.s32 0, %v33
    %v35 = vrot.slane %v22, %v34
    %vm36 = vcmp.eq.s32.totalorder %v24, %v35
    %vm37 = vcmp.eq.s32.totalorder %v25, %v35
    %v38 = vsel %vm30, 1, 0
    %v39 = vsel %vm31, 1, 0
    %v40 = vcvt.s32.f32 %v38
    %v41 = vcvt.s32.f32 %v39
    %v42 = vsel %vm36, 1, 0
    %v43 = vsel %vm37, 1, 0
    %v44 = vcvt.s32.f32 %v42
    %v45 = vcvt.s32.f32 %v43
    %v46 = vld [vmem:[%s2] sm:$0xff]
    %v47 = vld [vmem:[%s2 + $0x8] sm:$0xff]
    %v48 = vld [vmem:[%s2 + $0x10] sm:$0xff]
    %v49 = vld [vmem:[%s2 + $0x18] sm:$0xff]
    %v50 = vld [vmem:[%s2 + $0x20] sm:$0xff]
    %vm51 = vcmask 130048
    %v53 = vsel %vm51, %v46, 0
    %v56 = vsel %vm51, %v47, 0
    %v59 = vsel %vm51, %v48, 0
    %v62 = vsel %vm51, %v49, 0
    %v65 = vsel %vm51, %v50, 0
    %67 = vmatprep.subr.mxu0 0.0
    %68 = vmatpush1.msra.mxu0 0.0
    %69 = vmatprep.subr.mxu0 0.0
    %70 = vmatpush1.msra.mxu0 0.0
    %71 = vmatprep.subr.mxu0 0.0
    %72 = vmatpush1.msra.mxu0 0.0
    %73 = vmatprep.subr.mxu0 0.0
    %74 = vmatpush1.msra.mxu0 0.0
    %75 = vmatprep.subr.mxu0 0.0
    %76 = vmatpush1.msra.mxu0 0.0
    %77 = vmatprep.subr.mxu0 0.0
    %78 = vmatpush1.msra.mxu0 0.0
    %79 = vmatprep.subr.mxu0 0.0
    %80 = vmatpush1.msra.mxu0 0.0
    %81 = vmatprep.subr.mxu0 0.0
    %82 = vmatpush1.msra.mxu0 0.0
    %83 = vmatprep.subr.mxu0 0.0
    %84 = vmatpush1.msra.mxu0 0.0
    %85 = vmatprep.subr.mxu0 0.0
    %86 = vmatpush1.msra.mxu0 0.0
    %87 = vmatprep.subr.mxu0 0.0
    %88 = vmatpush1.msra.mxu0 0.0
    %89 = vmatprep.subr.mxu0 0.0
    %90 = vmatpush1.msra.mxu0 0.0
    %91 = vmatprep.subr.mxu0 0.0
    %92 = vmatpush1.msra.mxu0 0.0
    %93 = vmatprep.subr.mxu0 0.0
    %94 = vmatpush1.msra.mxu0 0.0
    %95 = vmatprep.subr.mxu0 0.0
    %v96 = vand.u32 %v41, 4294901760
    %97 = vmatpush1.msra.mxu0 %v96
    %98 = vmatprep.subr.mxu0 0.0
    %v99 = vand.u32 %v40, 4294901760
    %100 = vmatpush1.msra.mxu0 %v99
    %101 = vmatprep.subr.mxu0 0.0
    %102 = vmatpush2.msra.mxu0 0.0
    %103 = vmatprep.subr.mxu0 0.0
    %104 = vmatpush2.msra.mxu0 0.0
    %105 = vmatprep.subr.mxu0 0.0
    %106 = vmatpush2.msra.mxu0 0.0
    %107 = vmatprep.subr.mxu0 0.0
    %108 = vmatpush2.msra.mxu0 0.0
    %109 = vmatprep.subr.mxu0 0.0
    %110 = vmatpush2.msra.mxu0 0.0
    %111 = vmatprep.subr.mxu0 0.0
    %112 = vmatpush2.msra.mxu0 0.0
    %113 = vmatprep.subr.mxu0 0.0
    %114 = vmatpush2.msra.mxu0 0.0
    %115 = vmatprep.subr.mxu0 0.0
    %116 = vmatpush2.msra.mxu0 0.0
    %117 = vmatprep.subr.mxu0 0.0
    %118 = vmatpush2.msra.mxu0 0.0
    %119 = vmatprep.subr.mxu0 0.0
    %120 = vmatpush2.msra.mxu0 0.0
    %121 = vmatprep.subr.mxu0 0.0
    %122 = vmatpush2.msra.mxu0 0.0
    %123 = vmatprep.subr.mxu0 0.0
    %124 = vmatpush2.msra.mxu0 0.0
    %125 = vmatprep.subr.mxu0 0.0
    %126 = vmatpush2.msra.mxu0 0.0
    %127 = vmatprep.subr.mxu0 0.0
    %128 = vmatpush2.msra.mxu0 0.0
    %129 = vmatprep.subr.mxu0 0.0
    %130 = vmatpush2.msra.mxu0 0.0
    %131 = vmatprep.subr.mxu0 0.0
    %132 = vmatpush2.msra.mxu0 0.0
    %133 = vmatprep.mubr.f32.mxu0 0.0
    %v134 = vand.u32 %v53, 4294901760
    %v135 = vsub.f32 %v53, %v134
    %v136 = vand.u32 %v135, 4294901760
    %v137 = vsub.f32 %v135, %v136
    %v138 = vand.u32 %v137, 4294901760
    %139 = vmatmul.mubr.f32.gmra.mxu0 %v138
    %v140 = vpop.f32.mrf.mxu0
    %v141 = vadd.f32 0.0, %v140
    %v142 = vpop.f32.mrf.mxu0
    %143 = vmatprep.mubr.f32.mxu0 0.0
    %v144 = vand.u32 %v56, 4294901760
    %v145 = vsub.f32 %v56, %v144
    %v146 = vand.u32 %v145, 4294901760
    %v147 = vsub.f32 %v145, %v146
    %v148 = vand.u32 %v147, 4294901760
    %149 = vmatmul.mubr.f32.gmra.mxu0 %v148
    %v150 = vpop.f32.mrf.mxu0
    %v151 = vadd.f32 0.0, %v150
    %v152 = vpop.f32.mrf.mxu0
    %153 = vmatprep.mubr.f32.mxu0 0.0
    %v154 = vand.u32 %v59, 4294901760
    %v155 = vsub.f32 %v59, %v154
    %v156 = vand.u32 %v155, 4294901760
    %v157 = vsub.f32 %v155, %v156
    %v158 = vand.u32 %v157, 4294901760
    %159 = vmatmul.mubr.f32.gmra.mxu0 %v158
    %v160 = vpop.f32.mrf.mxu0
    %v161 = vadd.f32 0.0, %v160
    %v162 = vpop.f32.mrf.mxu0
    %163 = vmatprep.mubr.f32.mxu0 0.0
    %v164 = vand.u32 %v62, 4294901760
    %v165 = vsub.f32 %v62, %v164
    %v166 = vand.u32 %v165, 4294901760
    %v167 = vsub.f32 %v165, %v166
    %v168 = vand.u32 %v167, 4294901760
    %169 = vmatmul.mubr.f32.gmra.mxu0 %v168
    %v170 = vpop.f32.mrf.mxu0
    %v171 = vadd.f32 0.0, %v170
    %v172 = vpop.f32.mrf.mxu0
    %173 = vmatprep.mubr.f32.mxu0 0.0
    %v174 = vand.u32 %v65, 4294901760
    %v175 = vsub.f32 %v65, %v174
    %v176 = vand.u32 %v175, 4294901760
    %v177 = vsub.f32 %v175, %v176
    %v178 = vand.u32 %v177, 4294901760
    %179 = vmatmul.mubr.f32.gmra.mxu0 %v178
    %v180 = vpop.f32.mrf.mxu0
    %v181 = vadd.f32 0.0, %v180
    %v182 = vpop.f32.mrf.mxu0
    %183 = vdwg.mxu0
    %184 = vmatprep.subr.mxu0 0.0
    %185 = vmatpush1.msra.mxu0 0.0
    %186 = vmatprep.subr.mxu0 0.0
    %187 = vmatpush1.msra.mxu0 0.0
    %188 = vmatprep.subr.mxu0 0.0
    %189 = vmatpush1.msra.mxu0 0.0
    %190 = vmatprep.subr.mxu0 0.0
    %191 = vmatpush1.msra.mxu0 0.0
    %192 = vmatprep.subr.mxu0 0.0
    %193 = vmatpush1.msra.mxu0 0.0
    %194 = vmatprep.subr.mxu0 0.0
    %195 = vmatpush1.msra.mxu0 0.0
    %196 = vmatprep.subr.mxu0 0.0
    %197 = vmatpush1.msra.mxu0 0.0
    %198 = vmatprep.subr.mxu0 0.0
    %199 = vmatpush1.msra.mxu0 0.0
    %200 = vmatprep.subr.mxu0 0.0
    %201 = vmatpush1.msra.mxu0 0.0
    %202 = vmatprep.subr.mxu0 0.0
    %203 = vmatpush1.msra.mxu0 0.0
    %204 = vmatprep.subr.mxu0 0.0
    %205 = vmatpush1.msra.mxu0 0.0
    %206 = vmatprep.subr.mxu0 0.0
    %207 = vmatpush1.msra.mxu0 0.0
    %208 = vmatprep.subr.mxu0 0.0
    %209 = vmatpush1.msra.mxu0 0.0
    %210 = vmatprep.subr.mxu0 0.0
    %211 = vmatpush1.msra.mxu0 0.0
    %212 = vmatprep.subr.mxu0 0.0
    %v213 = vand.u32 %v41, 4294901760
    %v214 = vsub.f32 %v41, %v213
    %v215 = vand.u32 %v214, 4294901760
    %v216 = vsub.f32 %v214, %v215
    %v217 = vand.u32 %v216, 4294901760
    %218 = vmatpush1.msra.mxu0 %v217
    %219 = vmatprep.subr.mxu0 0.0
    %v220 = vand.u32 %v40, 4294901760
    %v221 = vsub.f32 %v40, %v220
    %v222 = vand.u32 %v221, 4294901760
    %v223 = vsub.f32 %v221, %v222
    %v224 = vand.u32 %v223, 4294901760
    %225 = vmatpush1.msra.mxu0 %v224
    %226 = vmatprep.subr.mxu0 0.0
    %227 = vmatpush2.msra.mxu0 0.0
    %228 = vmatprep.subr.mxu0 0.0
    %229 = vmatpush2.msra.mxu0 0.0
    %230 = vmatprep.subr.mxu0 0.0
    %231 = vmatpush2.msra.mxu0 0.0
    %232 = vmatprep.subr.mxu0 0.0
    %233 = vmatpush2.msra.mxu0 0.0
    %234 = vmatprep.subr.mxu0 0.0
    %235 = vmatpush2.msra.mxu0 0.0
    %236 = vmatprep.subr.mxu0 0.0
    %237 = vmatpush2.msra.mxu0 0.0
    %238 = vmatprep.subr.mxu0 0.0
    %239 = vmatpush2.msra.mxu0 0.0
    %240 = vmatprep.subr.mxu0 0.0
    %241 = vmatpush2.msra.mxu0 0.0
    %242 = vmatprep.subr.mxu0 0.0
    %243 = vmatpush2.msra.mxu0 0.0
    %244 = vmatprep.subr.mxu0 0.0
    %245 = vmatpush2.msra.mxu0 0.0
    %246 = vmatprep.subr.mxu0 0.0
    %247 = vmatpush2.msra.mxu0 0.0
    %248 = vmatprep.subr.mxu0 0.0
    %249 = vmatpush2.msra.mxu0 0.0
    %250 = vmatprep.subr.mxu0 0.0
    %251 = vmatpush2.msra.mxu0 0.0
    %252 = vmatprep.subr.mxu0 0.0
    %253 = vmatpush2.msra.mxu0 0.0
    %254 = vmatprep.subr.mxu0 0.0
    %255 = vmatpush2.msra.mxu0 0.0
    %256 = vmatprep.subr.mxu0 0.0
    %257 = vmatpush2.msra.mxu0 0.0
    %258 = vmatprep.mubr.f32.mxu0 0.0
    %v259 = vand.u32 %v53, 4294901760
    %260 = vmatmul.mubr.f32.gmra.mxu0 %v259
    %v261 = vpop.f32.mrf.mxu0
    %v262 = vadd.f32 %v141, %v261
    %v263 = vpop.f32.mrf.mxu0
    %264 = vmatprep.mubr.f32.mxu0 0.0
    %v265 = vand.u32 %v56, 4294901760
    %266 = vmatmul.mubr.f32.gmra.mxu0 %v265
    %v267 = vpop.f32.mrf.mxu0
    %v268 = vadd.f32 %v151, %v267
    %v269 = vpop.f32.mrf.mxu0
    %270 = vmatprep.mubr.f32.mxu0 0.0
    %v271 = vand.u32 %v59, 4294901760
    %272 = vmatmul.mubr.f32.gmra.mxu0 %v271
    %v273 = vpop.f32.mrf.mxu0
    %v274 = vadd.f32 %v161, %v273
    %v275 = vpop.f32.mrf.mxu0
    %276 = vmatprep.mubr.f32.mxu0 0.0
    %v277 = vand.u32 %v62, 4294901760
    %278 = vmatmul.mubr.f32.gmra.mxu0 %v277
    %v279 = vpop.f32.mrf.mxu0
    %v280 = vadd.f32 %v171, %v279
    %v281 = vpop.f32.mrf.mxu0
    %282 = vmatprep.mubr.f32.mxu0 0.0
    %v283 = vand.u32 %v65, 4294901760
    %284 = vmatmul.mubr.f32.gmra.mxu0 %v283
    %v285 = vpop.f32.mrf.mxu0
    %v286 = vadd.f32 %v181, %v285
    %v287 = vpop.f32.mrf.mxu0
    %288 = vdwg.mxu0
    %289 = vmatprep.subr.mxu0 0.0
    %290 = vmatpush1.msra.mxu0 0.0
    %291 = vmatprep.subr.mxu0 0.0
    %292 = vmatpush1.msra.mxu0 0.0
    %293 = vmatprep.subr.mxu0 0.0
    %294 = vmatpush1.msra.mxu0 0.0
    %295 = vmatprep.subr.mxu0 0.0
    %296 = vmatpush1.msra.mxu0 0.0
    %297 = vmatprep.subr.mxu0 0.0
    %298 = vmatpush1.msra.mxu0 0.0
    %299 = vmatprep.subr.mxu0 0.0
    %300 = vmatpush1.msra.mxu0 0.0
    %301 = vmatprep.subr.mxu0 0.0
    %302 = vmatpush1.msra.mxu0 0.0
    %303 = vmatprep.subr.mxu0 0.0
    %304 = vmatpush1.msra.mxu0 0.0
    %305 = vmatprep.subr.mxu0 0.0
    %306 = vmatpush1.msra.mxu0 0.0
    %307 = vmatprep.subr.mxu0 0.0
    %308 = vmatpush1.msra.mxu0 0.0
    %309 = vmatprep.subr.mxu0 0.0
    %310 = vmatpush1.msra.mxu0 0.0
    %311 = vmatprep.subr.mxu0 0.0
    %312 = vmatpush1.msra.mxu0 0.0
    %313 = vmatprep.subr.mxu0 0.0
    %314 = vmatpush1.msra.mxu0 0.0
    %315 = vmatprep.subr.mxu0 0.0
    %316 = vmatpush1.msra.mxu0 0.0
    %317 = vmatprep.subr.mxu0 0.0
    %v318 = vand.u32 %v41, 4294901760
    %v319 = vsub.f32 %v41, %v318
    %320 = vmatpush1.msra.mxu0 %v319
    %321 = vmatprep.subr.mxu0 0.0
    %v322 = vand.u32 %v40, 4294901760
    %v323 = vsub.f32 %v40, %v322
    %324 = vmatpush1.msra.mxu0 %v323
    %325 = vmatprep.subr.mxu0 0.0
    %326 = vmatpush2.msra.mxu0 0.0
    %327 = vmatprep.subr.mxu0 0.0
    %328 = vmatpush2.msra.mxu0 0.0
    %329 = vmatprep.subr.mxu0 0.0
    %330 = vmatpush2.msra.mxu0 0.0
    %331 = vmatprep.subr.mxu0 0.0
    %332 = vmatpush2.msra.mxu0 0.0
    %333 = vmatprep.subr.mxu0 0.0
    %334 = vmatpush2.msra.mxu0 0.0
    %335 = vmatprep.subr.mxu0 0.0
    %336 = vmatpush2.msra.mxu0 0.0
    %337 = vmatprep.subr.mxu0 0.0
    %338 = vmatpush2.msra.mxu0 0.0
    %339 = vmatprep.subr.mxu0 0.0
    %340 = vmatpush2.msra.mxu0 0.0
    %341 = vmatprep.subr.mxu0 0.0
    %342 = vmatpush2.msra.mxu0 0.0
    %343 = vmatprep.subr.mxu0 0.0
    %344 = vmatpush2.msra.mxu0 0.0
    %345 = vmatprep.subr.mxu0 0.0
    %346 = vmatpush2.msra.mxu0 0.0
    %347 = vmatprep.subr.mxu0 0.0
    %348 = vmatpush2.msra.mxu0 0.0
    %349 = vmatprep.subr.mxu0 0.0
    %350 = vmatpush2.msra.mxu0 0.0
    %351 = vmatprep.subr.mxu0 0.0
    %352 = vmatpush2.msra.mxu0 0.0
    %353 = vmatprep.subr.mxu0 0.0
    %354 = vmatpush2.msra.mxu0 0.0
    %355 = vmatprep.subr.mxu0 0.0
    %356 = vmatpush2.msra.mxu0 0.0
    %357 = vmatprep.mubr.f32.mxu0 0.0
    %v358 = vand.u32 %v53, 4294901760
    %v359 = vsub.f32 %v53, %v358
    %360 = vmatmul.mubr.f32.gmra.mxu0 %v359
    %v361 = vpop.f32.mrf.mxu0
    %v362 = vadd.f32 %v262, %v361
    %v363 = vpop.f32.mrf.mxu0
    %364 = vmatprep.mubr.f32.mxu0 0.0
    %v365 = vand.u32 %v56, 4294901760
    %v366 = vsub.f32 %v56, %v365
    %367 = vmatmul.mubr.f32.gmra.mxu0 %v366
    %v368 = vpop.f32.mrf.mxu0
    %v369 = vadd.f32 %v268, %v368
    %v370 = vpop.f32.mrf.mxu0
    %371 = vmatprep.mubr.f32.mxu0 0.0
    %v372 = vand.u32 %v59, 4294901760
    %v373 = vsub.f32 %v59, %v372
    %374 = vmatmul.mubr.f32.gmra.mxu0 %v373
    %v375 = vpop.f32.mrf.mxu0
    %v376 = vadd.f32 %v274, %v375
    %v377 = vpop.f32.mrf.mxu0
    %378 = vmatprep.mubr.f32.mxu0 0.0
    %v379 = vand.u32 %v62, 4294901760
    %v380 = vsub.f32 %v62, %v379
    %381 = vmatmul.mubr.f32.gmra.mxu0 %v380
    %v382 = vpop.f32.mrf.mxu0
    %v383 = vadd.f32 %v280, %v382
    %v384 = vpop.f32.mrf.mxu0
    %385 = vmatprep.mubr.f32.mxu0 0.0
    %v386 = vand.u32 %v65, 4294901760
    %v387 = vsub.f32 %v65, %v386
    %388 = vmatmul.mubr.f32.gmra.mxu0 %v387
    %v389 = vpop.f32.mrf.mxu0
    %v390 = vadd.f32 %v286, %v389
    %v391 = vpop.f32.mrf.mxu0
    %392 = vdwg.mxu0
    %393 = vmatprep.subr.mxu0 0.0
    %394 = vmatpush1.msra.mxu0 0.0
    %395 = vmatprep.subr.mxu0 0.0
    %396 = vmatpush1.msra.mxu0 0.0
    %397 = vmatprep.subr.mxu0 0.0
    %398 = vmatpush1.msra.mxu0 0.0
    %399 = vmatprep.subr.mxu0 0.0
    %400 = vmatpush1.msra.mxu0 0.0
    %401 = vmatprep.subr.mxu0 0.0
    %402 = vmatpush1.msra.mxu0 0.0
    %403 = vmatprep.subr.mxu0 0.0
    %404 = vmatpush1.msra.mxu0 0.0
    %405 = vmatprep.subr.mxu0 0.0
    %406 = vmatpush1.msra.mxu0 0.0
    %407 = vmatprep.subr.mxu0 0.0
    %408 = vmatpush1.msra.mxu0 0.0
    %409 = vmatprep.subr.mxu0 0.0
    %410 = vmatpush1.msra.mxu0 0.0
    %411 = vmatprep.subr.mxu0 0.0
    %412 = vmatpush1.msra.mxu0 0.0
    %413 = vmatprep.subr.mxu0 0.0
    %414 = vmatpush1.msra.mxu0 0.0
    %415 = vmatprep.subr.mxu0 0.0
    %416 = vmatpush1.msra.mxu0 0.0
    %417 = vmatprep.subr.mxu0 0.0
    %418 = vmatpush1.msra.mxu0 0.0
    %419 = vmatprep.subr.mxu0 0.0
    %420 = vmatpush1.msra.mxu0 0.0
    %421 = vmatprep.subr.mxu0 0.0
    %v422 = vand.u32 %v41, 4294901760
    %423 = vmatpush1.msra.mxu0 %v422
    %424 = vmatprep.subr.mxu0 0.0
    %v425 = vand.u32 %v40, 4294901760
    %426 = vmatpush1.msra.mxu0 %v425
    %427 = vmatprep.subr.mxu0 0.0
    %428 = vmatpush2.msra.mxu0 0.0
    %429 = vmatprep.subr.mxu0 0.0
    %430 = vmatpush2.msra.mxu0 0.0
    %431 = vmatprep.subr.mxu0 0.0
    %432 = vmatpush2.msra.mxu0 0.0
    %433 = vmatprep.subr.mxu0 0.0
    %434 = vmatpush2.msra.mxu0 0.0
    %435 = vmatprep.subr.mxu0 0.0
    %436 = vmatpush2.msra.mxu0 0.0
    %437 = vmatprep.subr.mxu0 0.0
    %438 = vmatpush2.msra.mxu0 0.0
    %439 = vmatprep.subr.mxu0 0.0
    %440 = vmatpush2.msra.mxu0 0.0
    %441 = vmatprep.subr.mxu0 0.0
    %442 = vmatpush2.msra.mxu0 0.0
    %443 = vmatprep.subr.mxu0 0.0
    %444 = vmatpush2.msra.mxu0 0.0
    %445 = vmatprep.subr.mxu0 0.0
    %446 = vmatpush2.msra.mxu0 0.0
    %447 = vmatprep.subr.mxu0 0.0
    %448 = vmatpush2.msra.mxu0 0.0
    %449 = vmatprep.subr.mxu0 0.0
    %450 = vmatpush2.msra.mxu0 0.0
    %451 = vmatprep.subr.mxu0 0.0
    %452 = vmatpush2.msra.mxu0 0.0
    %453 = vmatprep.subr.mxu0 0.0
    %454 = vmatpush2.msra.mxu0 0.0
    %455 = vmatprep.subr.mxu0 0.0
    %456 = vmatpush2.msra.mxu0 0.0
    %457 = vmatprep.subr.mxu0 0.0
    %458 = vmatpush2.msra.mxu0 0.0
    %459 = vmatprep.mubr.f32.mxu0 0.0
    %v460 = vand.u32 %v53, 4294901760
    %v461 = vsub.f32 %v53, %v460
    %v462 = vand.u32 %v461, 4294901760
    %463 = vmatmul.mubr.f32.gmra.mxu0 %v462
    %v464 = vpop.f32.mrf.mxu0
    %v465 = vadd.f32 %v362, %v464
    %v466 = vpop.f32.mrf.mxu0
    %467 = vmatprep.mubr.f32.mxu0 0.0
    %v468 = vand.u32 %v56, 4294901760
    %v469 = vsub.f32 %v56, %v468
    %v470 = vand.u32 %v469, 4294901760
    %471 = vmatmul.mubr.f32.gmra.mxu0 %v470
    %v472 = vpop.f32.mrf.mxu0
    %v473 = vadd.f32 %v369, %v472
    %v474 = vpop.f32.mrf.mxu0
    %475 = vmatprep.mubr.f32.mxu0 0.0
    %v476 = vand.u32 %v59, 4294901760
    %v477 = vsub.f32 %v59, %v476
    %v478 = vand.u32 %v477, 4294901760
    %479 = vmatmul.mubr.f32.gmra.mxu0 %v478
    %v480 = vpop.f32.mrf.mxu0
    %v481 = vadd.f32 %v376, %v480
    %v482 = vpop.f32.mrf.mxu0
    %483 = vmatprep.mubr.f32.mxu0 0.0
    %v484 = vand.u32 %v62, 4294901760
    %v485 = vsub.f32 %v62, %v484
    %v486 = vand.u32 %v485, 4294901760
    %487 = vmatmul.mubr.f32.gmra.mxu0 %v486
    %v488 = vpop.f32.mrf.mxu0
    %v489 = vadd.f32 %v383, %v488
    %v490 = vpop.f32.mrf.mxu0
    %491 = vmatprep.mubr.f32.mxu0 0.0
    %v492 = vand.u32 %v65, 4294901760
    %v493 = vsub.f32 %v65, %v492
    %v494 = vand.u32 %v493, 4294901760
    %495 = vmatmul.mubr.f32.gmra.mxu0 %v494
    %v496 = vpop.f32.mrf.mxu0
    %v497 = vadd.f32 %v390, %v496
    %v498 = vpop.f32.mrf.mxu0
    %499 = vdwg.mxu0
    %500 = vmatprep.subr.mxu0 0.0
    %501 = vmatpush1.msra.mxu0 0.0
    %502 = vmatprep.subr.mxu0 0.0
    %503 = vmatpush1.msra.mxu0 0.0
    %504 = vmatprep.subr.mxu0 0.0
    %505 = vmatpush1.msra.mxu0 0.0
    %506 = vmatprep.subr.mxu0 0.0
    %507 = vmatpush1.msra.mxu0 0.0
    %508 = vmatprep.subr.mxu0 0.0
    %509 = vmatpush1.msra.mxu0 0.0
    %510 = vmatprep.subr.mxu0 0.0
    %511 = vmatpush1.msra.mxu0 0.0
    %512 = vmatprep.subr.mxu0 0.0
    %513 = vmatpush1.msra.mxu0 0.0
    %514 = vmatprep.subr.mxu0 0.0
    %515 = vmatpush1.msra.mxu0 0.0
    %516 = vmatprep.subr.mxu0 0.0
    %517 = vmatpush1.msra.mxu0 0.0
    %518 = vmatprep.subr.mxu0 0.0
    %519 = vmatpush1.msra.mxu0 0.0
    %520 = vmatprep.subr.mxu0 0.0
    %521 = vmatpush1.msra.mxu0 0.0
    %522 = vmatprep.subr.mxu0 0.0
    %523 = vmatpush1.msra.mxu0 0.0
    %524 = vmatprep.subr.mxu0 0.0
    %525 = vmatpush1.msra.mxu0 0.0
    %526 = vmatprep.subr.mxu0 0.0
    %527 = vmatpush1.msra.mxu0 0.0
    %528 = vmatprep.subr.mxu0 0.0
    %v529 = vand.u32 %v41, 4294901760
    %v530 = vsub.f32 %v41, %v529
    %v531 = vand.u32 %v530, 4294901760
    %532 = vmatpush1.msra.mxu0 %v531
    %533 = vmatprep.subr.mxu0 0.0
    %v534 = vand.u32 %v40, 4294901760
    %v535 = vsub.f32 %v40, %v534
    %v536 = vand.u32 %v535, 4294901760
    %537 = vmatpush1.msra.mxu0 %v536
    %538 = vmatprep.subr.mxu0 0.0
    %539 = vmatpush2.msra.mxu0 0.0
    %540 = vmatprep.subr.mxu0 0.0
    %541 = vmatpush2.msra.mxu0 0.0
    %542 = vmatprep.subr.mxu0 0.0
    %543 = vmatpush2.msra.mxu0 0.0
    %544 = vmatprep.subr.mxu0 0.0
    %545 = vmatpush2.msra.mxu0 0.0
    %546 = vmatprep.subr.mxu0 0.0
    %547 = vmatpush2.msra.mxu0 0.0
    %548 = vmatprep.subr.mxu0 0.0
    %549 = vmatpush2.msra.mxu0 0.0
    %550 = vmatprep.subr.mxu0 0.0
    %551 = vmatpush2.msra.mxu0 0.0
    %552 = vmatprep.subr.mxu0 0.0
    %553 = vmatpush2.msra.mxu0 0.0
    %554 = vmatprep.subr.mxu0 0.0
    %555 = vmatpush2.msra.mxu0 0.0
    %556 = vmatprep.subr.mxu0 0.0
    %557 = vmatpush2.msra.mxu0 0.0
    %558 = vmatprep.subr.mxu0 0.0
    %559 = vmatpush2.msra.mxu0 0.0
    %560 = vmatprep.subr.mxu0 0.0
    %561 = vmatpush2.msra.mxu0 0.0
    %562 = vmatprep.subr.mxu0 0.0
    %563 = vmatpush2.msra.mxu0 0.0
    %564 = vmatprep.subr.mxu0 0.0
    %565 = vmatpush2.msra.mxu0 0.0
    %566 = vmatprep.subr.mxu0 0.0
    %567 = vmatpush2.msra.mxu0 0.0
    %568 = vmatprep.subr.mxu0 0.0
    %569 = vmatpush2.msra.mxu0 0.0
    %570 = vmatprep.mubr.f32.mxu0 0.0
    %v571 = vand.u32 %v53, 4294901760
    %572 = vmatmul.mubr.f32.gmra.mxu0 %v571
    %v573 = vpop.f32.mrf.mxu0
    %v574 = vadd.f32 %v465, %v573
    %v575 = vpop.f32.mrf.mxu0
    %576 = vmatprep.mubr.f32.mxu0 0.0
    %v577 = vand.u32 %v56, 4294901760
    %578 = vmatmul.mubr.f32.gmra.mxu0 %v577
    %v579 = vpop.f32.mrf.mxu0
    %v580 = vadd.f32 %v473, %v579
    %v581 = vpop.f32.mrf.mxu0
    %582 = vmatprep.mubr.f32.mxu0 0.0
    %v583 = vand.u32 %v59, 4294901760
    %584 = vmatmul.mubr.f32.gmra.mxu0 %v583
    %v585 = vpop.f32.mrf.mxu0
    %v586 = vadd.f32 %v481, %v585
    %v587 = vpop.f32.mrf.mxu0
    %588 = vmatprep.mubr.f32.mxu0 0.0
    %v589 = vand.u32 %v62, 4294901760
    %590 = vmatmul.mubr.f32.gmra.mxu0 %v589
    %v591 = vpop.f32.mrf.mxu0
    %v592 = vadd.f32 %v489, %v591
    %v593 = vpop.f32.mrf.mxu0
    %594 = vmatprep.mubr.f32.mxu0 0.0
    %v595 = vand.u32 %v65, 4294901760
    %596 = vmatmul.mubr.f32.gmra.mxu0 %v595
    %v597 = vpop.f32.mrf.mxu0
    %v598 = vadd.f32 %v497, %v597
    %v599 = vpop.f32.mrf.mxu0
    %600 = vdwg.mxu0
    %601 = vmatprep.subr.mxu0 0.0
    %602 = vmatpush1.msra.mxu0 0.0
    %603 = vmatprep.subr.mxu0 0.0
    %604 = vmatpush1.msra.mxu0 0.0
    %605 = vmatprep.subr.mxu0 0.0
    %606 = vmatpush1.msra.mxu0 0.0
    %607 = vmatprep.subr.mxu0 0.0
    %608 = vmatpush1.msra.mxu0 0.0
    %609 = vmatprep.subr.mxu0 0.0
    %610 = vmatpush1.msra.mxu0 0.0
    %611 = vmatprep.subr.mxu0 0.0
    %612 = vmatpush1.msra.mxu0 0.0
    %613 = vmatprep.subr.mxu0 0.0
    %614 = vmatpush1.msra.mxu0 0.0
    %615 = vmatprep.subr.mxu0 0.0
    %616 = vmatpush1.msra.mxu0 0.0
    %617 = vmatprep.subr.mxu0 0.0
    %618 = vmatpush1.msra.mxu0 0.0
    %619 = vmatprep.subr.mxu0 0.0
    %620 = vmatpush1.msra.mxu0 0.0
    %621 = vmatprep.subr.mxu0 0.0
    %622 = vmatpush1.msra.mxu0 0.0
    %623 = vmatprep.subr.mxu0 0.0
    %624 = vmatpush1.msra.mxu0 0.0
    %625 = vmatprep.subr.mxu0 0.0
    %626 = vmatpush1.msra.mxu0 0.0
    %627 = vmatprep.subr.mxu0 0.0
    %628 = vmatpush1.msra.mxu0 0.0
    %629 = vmatprep.subr.mxu0 0.0
    %v630 = vand.u32 %v41, 4294901760
    %631 = vmatpush1.msra.mxu0 %v630
    %632 = vmatprep.subr.mxu0 0.0
    %v633 = vand.u32 %v40, 4294901760
    %634 = vmatpush1.msra.mxu0 %v633
    %635 = vmatprep.subr.mxu0 0.0
    %636 = vmatpush2.msra.mxu0 0.0
    %637 = vmatprep.subr.mxu0 0.0
    %638 = vmatpush2.msra.mxu0 0.0
    %639 = vmatprep.subr.mxu0 0.0
    %640 = vmatpush2.msra.mxu0 0.0
    %641 = vmatprep.subr.mxu0 0.0
    %642 = vmatpush2.msra.mxu0 0.0
    %643 = vmatprep.subr.mxu0 0.0
    %644 = vmatpush2.msra.mxu0 0.0
    %645 = vmatprep.subr.mxu0 0.0
    %646 = vmatpush2.msra.mxu0 0.0
    %647 = vmatprep.subr.mxu0 0.0
    %648 = vmatpush2.msra.mxu0 0.0
    %649 = vmatprep.subr.mxu0 0.0
    %650 = vmatpush2.msra.mxu0 0.0
    %651 = vmatprep.subr.mxu0 0.0
    %652 = vmatpush2.msra.mxu0 0.0
    %653 = vmatprep.subr.mxu0 0.0
    %654 = vmatpush2.msra.mxu0 0.0
    %655 = vmatprep.subr.mxu0 0.0
    %656 = vmatpush2.msra.mxu0 0.0
    %657 = vmatprep.subr.mxu0 0.0
    %658 = vmatpush2.msra.mxu0 0.0
    %659 = vmatprep.subr.mxu0 0.0
    %660 = vmatpush2.msra.mxu0 0.0
    %661 = vmatprep.subr.mxu0 0.0
    %662 = vmatpush2.msra.mxu0 0.0
    %663 = vmatprep.subr.mxu0 0.0
    %664 = vmatpush2.msra.mxu0 0.0
    %665 = vmatprep.subr.mxu0 0.0
    %666 = vmatpush2.msra.mxu0 0.0
    %667 = vmatprep.mubr.f32.mxu0 0.0
    %v668 = vand.u32 %v53, 4294901760
    %669 = vmatmul.mubr.f32.gmra.mxu0 %v668
    %v670 = vpop.f32.mrf.mxu0
    %v671 = vadd.f32 %v574, %v670
    %v672 = vpop.f32.mrf.mxu0
    %673 = vmatprep.mubr.f32.mxu0 0.0
    %v674 = vand.u32 %v56, 4294901760
    %675 = vmatmul.mubr.f32.gmra.mxu0 %v674
    %v676 = vpop.f32.mrf.mxu0
    %v677 = vadd.f32 %v580, %v676
    %v678 = vpop.f32.mrf.mxu0
    %679 = vmatprep.mubr.f32.mxu0 0.0
    %v680 = vand.u32 %v59, 4294901760
    %681 = vmatmul.mubr.f32.gmra.mxu0 %v680
    %v682 = vpop.f32.mrf.mxu0
    %v683 = vadd.f32 %v586, %v682
    %v684 = vpop.f32.mrf.mxu0
    %685 = vmatprep.mubr.f32.mxu0 0.0
    %v686 = vand.u32 %v62, 4294901760
    %687 = vmatmul.mubr.f32.gmra.mxu0 %v686
    %v688 = vpop.f32.mrf.mxu0
    %v689 = vadd.f32 %v592, %v688
    %v690 = vpop.f32.mrf.mxu0
    %691 = vmatprep.mubr.f32.mxu0 0.0
    %v692 = vand.u32 %v65, 4294901760
    %693 = vmatmul.mubr.f32.gmra.mxu0 %v692
    %v694 = vpop.f32.mrf.mxu0
    %v695 = vadd.f32 %v598, %v694
    %v696 = vpop.f32.mrf.mxu0
    %697 = vdwg.mxu0
    %v698 = vld [vmem:[%s3] sm:$0xff]
    %v699 = vld [vmem:[%s3 + $0x8] sm:$0xff]
    %v700 = vld [vmem:[%s3 + $0x10] sm:$0xff]
    %v701 = vld [vmem:[%s3 + $0x18] sm:$0xff]
    %v702 = vld [vmem:[%s3 + $0x20] sm:$0xff]
    %v704 = vsel %vm51, %v698, 0
    %v707 = vsel %vm51, %v699, 0
    %v710 = vsel %vm51, %v700, 0
    %v713 = vsel %vm51, %v701, 0
    %v716 = vsel %vm51, %v702, 0
    %718 = vmatprep.subr.mxu0 0.0
    %719 = vmatpush1.msra.mxu0 0.0
    %720 = vmatprep.subr.mxu0 0.0
    %721 = vmatpush1.msra.mxu0 0.0
    %722 = vmatprep.subr.mxu0 0.0
    %723 = vmatpush1.msra.mxu0 0.0
    %724 = vmatprep.subr.mxu0 0.0
    %725 = vmatpush1.msra.mxu0 0.0
    %726 = vmatprep.subr.mxu0 0.0
    %727 = vmatpush1.msra.mxu0 0.0
    %728 = vmatprep.subr.mxu0 0.0
    %729 = vmatpush1.msra.mxu0 0.0
    %730 = vmatprep.subr.mxu0 0.0
    %731 = vmatpush1.msra.mxu0 0.0
    %732 = vmatprep.subr.mxu0 0.0
    %733 = vmatpush1.msra.mxu0 0.0
    %734 = vmatprep.subr.mxu0 0.0
    %735 = vmatpush1.msra.mxu0 0.0
    %736 = vmatprep.subr.mxu0 0.0
    %737 = vmatpush1.msra.mxu0 0.0
    %738 = vmatprep.subr.mxu0 0.0
    %739 = vmatpush1.msra.mxu0 0.0
    %740 = vmatprep.subr.mxu0 0.0
    %741 = vmatpush1.msra.mxu0 0.0
    %742 = vmatprep.subr.mxu0 0.0
    %743 = vmatpush1.msra.mxu0 0.0
    %744 = vmatprep.subr.mxu0 0.0
    %745 = vmatpush1.msra.mxu0 0.0
    %746 = vmatprep.subr.mxu0 0.0
    %v747 = vand.u32 %v45, 4294901760
    %748 = vmatpush1.msra.mxu0 %v747
    %749 = vmatprep.subr.mxu0 0.0
    %v750 = vand.u32 %v44, 4294901760
    %751 = vmatpush1.msra.mxu0 %v750
    %752 = vmatprep.subr.mxu0 0.0
    %753 = vmatpush2.msra.mxu0 0.0
    %754 = vmatprep.subr.mxu0 0.0
    %755 = vmatpush2.msra.mxu0 0.0
    %756 = vmatprep.subr.mxu0 0.0
    %757 = vmatpush2.msra.mxu0 0.0
    %758 = vmatprep.subr.mxu0 0.0
    %759 = vmatpush2.msra.mxu0 0.0
    %760 = vmatprep.subr.mxu0 0.0
    %761 = vmatpush2.msra.mxu0 0.0
    %762 = vmatprep.subr.mxu0 0.0
    %763 = vmatpush2.msra.mxu0 0.0
    %764 = vmatprep.subr.mxu0 0.0
    %765 = vmatpush2.msra.mxu0 0.0
    %766 = vmatprep.subr.mxu0 0.0
    %767 = vmatpush2.msra.mxu0 0.0
    %768 = vmatprep.subr.mxu0 0.0
    %769 = vmatpush2.msra.mxu0 0.0
    %770 = vmatprep.subr.mxu0 0.0
    %771 = vmatpush2.msra.mxu0 0.0
    %772 = vmatprep.subr.mxu0 0.0
    %773 = vmatpush2.msra.mxu0 0.0
    %774 = vmatprep.subr.mxu0 0.0
    %775 = vmatpush2.msra.mxu0 0.0
    %776 = vmatprep.subr.mxu0 0.0
    %777 = vmatpush2.msra.mxu0 0.0
    %778 = vmatprep.subr.mxu0 0.0
    %779 = vmatpush2.msra.mxu0 0.0
    %780 = vmatprep.subr.mxu0 0.0
    %781 = vmatpush2.msra.mxu0 0.0
    %782 = vmatprep.subr.mxu0 0.0
    %783 = vmatpush2.msra.mxu0 0.0
    %784 = vmatprep.mubr.f32.mxu0 0.0
    %v785 = vand.u32 %v704, 4294901760
    %v786 = vsub.f32 %v704, %v785
    %v787 = vand.u32 %v786, 4294901760
    %v788 = vsub.f32 %v786, %v787
    %v789 = vand.u32 %v788, 4294901760
    %790 = vmatmul.mubr.f32.gmra.mxu0 %v789
    %v791 = vpop.f32.mrf.mxu0
    %v792 = vadd.f32 0.0, %v791
    %v793 = vpop.f32.mrf.mxu0
    %794 = vmatprep.mubr.f32.mxu0 0.0
    %v795 = vand.u32 %v707, 4294901760
    %v796 = vsub.f32 %v707, %v795
    %v797 = vand.u32 %v796, 4294901760
    %v798 = vsub.f32 %v796, %v797
    %v799 = vand.u32 %v798, 4294901760
    %800 = vmatmul.mubr.f32.gmra.mxu0 %v799
    %v801 = vpop.f32.mrf.mxu0
    %v802 = vadd.f32 0.0, %v801
    %v803 = vpop.f32.mrf.mxu0
    %804 = vmatprep.mubr.f32.mxu0 0.0
    %v805 = vand.u32 %v710, 4294901760
    %v806 = vsub.f32 %v710, %v805
    %v807 = vand.u32 %v806, 4294901760
    %v808 = vsub.f32 %v806, %v807
    %v809 = vand.u32 %v808, 4294901760
    %810 = vmatmul.mubr.f32.gmra.mxu0 %v809
    %v811 = vpop.f32.mrf.mxu0
    %v812 = vadd.f32 0.0, %v811
    %v813 = vpop.f32.mrf.mxu0
    %814 = vmatprep.mubr.f32.mxu0 0.0
    %v815 = vand.u32 %v713, 4294901760
    %v816 = vsub.f32 %v713, %v815
    %v817 = vand.u32 %v816, 4294901760
    %v818 = vsub.f32 %v816, %v817
    %v819 = vand.u32 %v818, 4294901760
    %820 = vmatmul.mubr.f32.gmra.mxu0 %v819
    %v821 = vpop.f32.mrf.mxu0
    %v822 = vadd.f32 0.0, %v821
    %v823 = vpop.f32.mrf.mxu0
    %824 = vmatprep.mubr.f32.mxu0 0.0
    %v825 = vand.u32 %v716, 4294901760
    %v826 = vsub.f32 %v716, %v825
    %v827 = vand.u32 %v826, 4294901760
    %v828 = vsub.f32 %v826, %v827
    %v829 = vand.u32 %v828, 4294901760
    %830 = vmatmul.mubr.f32.gmra.mxu0 %v829
    %v831 = vpop.f32.mrf.mxu0
    %v832 = vadd.f32 0.0, %v831
    %v833 = vpop.f32.mrf.mxu0
    %834 = vdwg.mxu0
    %835 = vmatprep.subr.mxu0 0.0
    %836 = vmatpush1.msra.mxu0 0.0
    %837 = vmatprep.subr.mxu0 0.0
    %838 = vmatpush1.msra.mxu0 0.0
    %839 = vmatprep.subr.mxu0 0.0
    %840 = vmatpush1.msra.mxu0 0.0
    %841 = vmatprep.subr.mxu0 0.0
    %842 = vmatpush1.msra.mxu0 0.0
    %843 = vmatprep.subr.mxu0 0.0
    %844 = vmatpush1.msra.mxu0 0.0
    %845 = vmatprep.subr.mxu0 0.0
    %846 = vmatpush1.msra.mxu0 0.0
    %847 = vmatprep.subr.mxu0 0.0
    %848 = vmatpush1.msra.mxu0 0.0
    %849 = vmatprep.subr.mxu0 0.0
    %850 = vmatpush1.msra.mxu0 0.0
    %851 = vmatprep.subr.mxu0 0.0
    %852 = vmatpush1.msra.mxu0 0.0
    %853 = vmatprep.subr.mxu0 0.0
    %854 = vmatpush1.msra.mxu0 0.0
    %855 = vmatprep.subr.mxu0 0.0
    %856 = vmatpush1.msra.mxu0 0.0
    %857 = vmatprep.subr.mxu0 0.0
    %858 = vmatpush1.msra.mxu0 0.0
    %859 = vmatprep.subr.mxu0 0.0
    %860 = vmatpush1.msra.mxu0 0.0
    %861 = vmatprep.subr.mxu0 0.0
    %862 = vmatpush1.msra.mxu0 0.0
    %863 = vmatprep.subr.mxu0 0.0
    %v864 = vand.u32 %v45, 4294901760
    %v865 = vsub.f32 %v45, %v864
    %v866 = vand.u32 %v865, 4294901760
    %v867 = vsub.f32 %v865, %v866
    %v868 = vand.u32 %v867, 4294901760
    %869 = vmatpush1.msra.mxu0 %v868
    %870 = vmatprep.subr.mxu0 0.0
    %v871 = vand.u32 %v44, 4294901760
    %v872 = vsub.f32 %v44, %v871
    %v873 = vand.u32 %v872, 4294901760
    %v874 = vsub.f32 %v872, %v873
    %v875 = vand.u32 %v874, 4294901760
    %876 = vmatpush1.msra.mxu0 %v875
    %877 = vmatprep.subr.mxu0 0.0
    %878 = vmatpush2.msra.mxu0 0.0
    %879 = vmatprep.subr.mxu0 0.0
    %880 = vmatpush2.msra.mxu0 0.0
    %881 = vmatprep.subr.mxu0 0.0
    %882 = vmatpush2.msra.mxu0 0.0
    %883 = vmatprep.subr.mxu0 0.0
    %884 = vmatpush2.msra.mxu0 0.0
    %885 = vmatprep.subr.mxu0 0.0
    %886 = vmatpush2.msra.mxu0 0.0
    %887 = vmatprep.subr.mxu0 0.0
    %888 = vmatpush2.msra.mxu0 0.0
    %889 = vmatprep.subr.mxu0 0.0
    %890 = vmatpush2.msra.mxu0 0.0
    %891 = vmatprep.subr.mxu0 0.0
    %892 = vmatpush2.msra.mxu0 0.0
    %893 = vmatprep.subr.mxu0 0.0
    %894 = vmatpush2.msra.mxu0 0.0
    %895 = vmatprep.subr.mxu0 0.0
    %896 = vmatpush2.msra.mxu0 0.0
    %897 = vmatprep.subr.mxu0 0.0
    %898 = vmatpush2.msra.mxu0 0.0
    %899 = vmatprep.subr.mxu0 0.0
    %900 = vmatpush2.msra.mxu0 0.0
    %901 = vmatprep.subr.mxu0 0.0
    %902 = vmatpush2.msra.mxu0 0.0
    %903 = vmatprep.subr.mxu0 0.0
    %904 = vmatpush2.msra.mxu0 0.0
    %905 = vmatprep.subr.mxu0 0.0
    %906 = vmatpush2.msra.mxu0 0.0
    %907 = vmatprep.subr.mxu0 0.0
    %908 = vmatpush2.msra.mxu0 0.0
    %909 = vmatprep.mubr.f32.mxu0 0.0
    %v910 = vand.u32 %v704, 4294901760
    %911 = vmatmul.mubr.f32.gmra.mxu0 %v910
    %v912 = vpop.f32.mrf.mxu0
    %v913 = vadd.f32 %v792, %v912
    %v914 = vpop.f32.mrf.mxu0
    %915 = vmatprep.mubr.f32.mxu0 0.0
    %v916 = vand.u32 %v707, 4294901760
    %917 = vmatmul.mubr.f32.gmra.mxu0 %v916
    %v918 = vpop.f32.mrf.mxu0
    %v919 = vadd.f32 %v802, %v918
    %v920 = vpop.f32.mrf.mxu0
    %921 = vmatprep.mubr.f32.mxu0 0.0
    %v922 = vand.u32 %v710, 4294901760
    %923 = vmatmul.mubr.f32.gmra.mxu0 %v922
    %v924 = vpop.f32.mrf.mxu0
    %v925 = vadd.f32 %v812, %v924
    %v926 = vpop.f32.mrf.mxu0
    %927 = vmatprep.mubr.f32.mxu0 0.0
    %v928 = vand.u32 %v713, 4294901760
    %929 = vmatmul.mubr.f32.gmra.mxu0 %v928
    %v930 = vpop.f32.mrf.mxu0
    %v931 = vadd.f32 %v822, %v930
    %v932 = vpop.f32.mrf.mxu0
    %933 = vmatprep.mubr.f32.mxu0 0.0
    %v934 = vand.u32 %v716, 4294901760
    %935 = vmatmul.mubr.f32.gmra.mxu0 %v934
    %v936 = vpop.f32.mrf.mxu0
    %v937 = vadd.f32 %v832, %v936
    %v938 = vpop.f32.mrf.mxu0
    %939 = vdwg.mxu0
    %940 = vmatprep.subr.mxu0 0.0
    %941 = vmatpush1.msra.mxu0 0.0
    %942 = vmatprep.subr.mxu0 0.0
    %943 = vmatpush1.msra.mxu0 0.0
    %944 = vmatprep.subr.mxu0 0.0
    %945 = vmatpush1.msra.mxu0 0.0
    %946 = vmatprep.subr.mxu0 0.0
    %947 = vmatpush1.msra.mxu0 0.0
    %948 = vmatprep.subr.mxu0 0.0
    %949 = vmatpush1.msra.mxu0 0.0
    %950 = vmatprep.subr.mxu0 0.0
    %951 = vmatpush1.msra.mxu0 0.0
    %952 = vmatprep.subr.mxu0 0.0
    %953 = vmatpush1.msra.mxu0 0.0
    %954 = vmatprep.subr.mxu0 0.0
    %955 = vmatpush1.msra.mxu0 0.0
    %956 = vmatprep.subr.mxu0 0.0
    %957 = vmatpush1.msra.mxu0 0.0
    %958 = vmatprep.subr.mxu0 0.0
    %959 = vmatpush1.msra.mxu0 0.0
    %960 = vmatprep.subr.mxu0 0.0
    %961 = vmatpush1.msra.mxu0 0.0
    %962 = vmatprep.subr.mxu0 0.0
    %963 = vmatpush1.msra.mxu0 0.0
    %964 = vmatprep.subr.mxu0 0.0
    %965 = vmatpush1.msra.mxu0 0.0
    %966 = vmatprep.subr.mxu0 0.0
    %967 = vmatpush1.msra.mxu0 0.0
    %968 = vmatprep.subr.mxu0 0.0
    %v969 = vand.u32 %v45, 4294901760
    %v970 = vsub.f32 %v45, %v969
    %971 = vmatpush1.msra.mxu0 %v970
    %972 = vmatprep.subr.mxu0 0.0
    %v973 = vand.u32 %v44, 4294901760
    %v974 = vsub.f32 %v44, %v973
    %975 = vmatpush1.msra.mxu0 %v974
    %976 = vmatprep.subr.mxu0 0.0
    %977 = vmatpush2.msra.mxu0 0.0
    %978 = vmatprep.subr.mxu0 0.0
    %979 = vmatpush2.msra.mxu0 0.0
    %980 = vmatprep.subr.mxu0 0.0
    %981 = vmatpush2.msra.mxu0 0.0
    %982 = vmatprep.subr.mxu0 0.0
    %983 = vmatpush2.msra.mxu0 0.0
    %984 = vmatprep.subr.mxu0 0.0
    %985 = vmatpush2.msra.mxu0 0.0
    %986 = vmatprep.subr.mxu0 0.0
    %987 = vmatpush2.msra.mxu0 0.0
    %988 = vmatprep.subr.mxu0 0.0
    %989 = vmatpush2.msra.mxu0 0.0
    %990 = vmatprep.subr.mxu0 0.0
    %991 = vmatpush2.msra.mxu0 0.0
    %992 = vmatprep.subr.mxu0 0.0
    %993 = vmatpush2.msra.mxu0 0.0
    %994 = vmatprep.subr.mxu0 0.0
    %995 = vmatpush2.msra.mxu0 0.0
    %996 = vmatprep.subr.mxu0 0.0
    %997 = vmatpush2.msra.mxu0 0.0
    %998 = vmatprep.subr.mxu0 0.0
    %999 = vmatpush2.msra.mxu0 0.0
    %1000 = vmatprep.subr.mxu0 0.0
    %1001 = vmatpush2.msra.mxu0 0.0
    %1002 = vmatprep.subr.mxu0 0.0
    %1003 = vmatpush2.msra.mxu0 0.0
    %1004 = vmatprep.subr.mxu0 0.0
    %1005 = vmatpush2.msra.mxu0 0.0
    %1006 = vmatprep.subr.mxu0 0.0
    %1007 = vmatpush2.msra.mxu0 0.0
    %1008 = vmatprep.mubr.f32.mxu0 0.0
    %v1009 = vand.u32 %v704, 4294901760
    %v1010 = vsub.f32 %v704, %v1009
    %1011 = vmatmul.mubr.f32.gmra.mxu0 %v1010
    %v1012 = vpop.f32.mrf.mxu0
    %v1013 = vadd.f32 %v913, %v1012
    %v1014 = vpop.f32.mrf.mxu0
    %1015 = vmatprep.mubr.f32.mxu0 0.0
    %v1016 = vand.u32 %v707, 4294901760
    %v1017 = vsub.f32 %v707, %v1016
    %1018 = vmatmul.mubr.f32.gmra.mxu0 %v1017
    %v1019 = vpop.f32.mrf.mxu0
    %v1020 = vadd.f32 %v919, %v1019
    %v1021 = vpop.f32.mrf.mxu0
    %1022 = vmatprep.mubr.f32.mxu0 0.0
    %v1023 = vand.u32 %v710, 4294901760
    %v1024 = vsub.f32 %v710, %v1023
    %1025 = vmatmul.mubr.f32.gmra.mxu0 %v1024
    %v1026 = vpop.f32.mrf.mxu0
    %v1027 = vadd.f32 %v925, %v1026
    %v1028 = vpop.f32.mrf.mxu0
    %1029 = vmatprep.mubr.f32.mxu0 0.0
    %v1030 = vand.u32 %v713, 4294901760
    %v1031 = vsub.f32 %v713, %v1030
    %1032 = vmatmul.mubr.f32.gmra.mxu0 %v1031
    %v1033 = vpop.f32.mrf.mxu0
    %v1034 = vadd.f32 %v931, %v1033
    %v1035 = vpop.f32.mrf.mxu0
    %1036 = vmatprep.mubr.f32.mxu0 0.0
    %v1037 = vand.u32 %v716, 4294901760
    %v1038 = vsub.f32 %v716, %v1037
    %1039 = vmatmul.mubr.f32.gmra.mxu0 %v1038
    %v1040 = vpop.f32.mrf.mxu0
    %v1041 = vadd.f32 %v937, %v1040
    %v1042 = vpop.f32.mrf.mxu0
    %1043 = vdwg.mxu0
    %1044 = vmatprep.subr.mxu0 0.0
    %1045 = vmatpush1.msra.mxu0 0.0
    %1046 = vmatprep.subr.mxu0 0.0
    %1047 = vmatpush1.msra.mxu0 0.0
    %1048 = vmatprep.subr.mxu0 0.0
    %1049 = vmatpush1.msra.mxu0 0.0
    %1050 = vmatprep.subr.mxu0 0.0
    %1051 = vmatpush1.msra.mxu0 0.0
    %1052 = vmatprep.subr.mxu0 0.0
    %1053 = vmatpush1.msra.mxu0 0.0
    %1054 = vmatprep.subr.mxu0 0.0
    %1055 = vmatpush1.msra.mxu0 0.0
    %1056 = vmatprep.subr.mxu0 0.0
    %1057 = vmatpush1.msra.mxu0 0.0
    %1058 = vmatprep.subr.mxu0 0.0
    %1059 = vmatpush1.msra.mxu0 0.0
    %1060 = vmatprep.subr.mxu0 0.0
    %1061 = vmatpush1.msra.mxu0 0.0
    %1062 = vmatprep.subr.mxu0 0.0
    %1063 = vmatpush1.msra.mxu0 0.0
    %1064 = vmatprep.subr.mxu0 0.0
    %1065 = vmatpush1.msra.mxu0 0.0
    %1066 = vmatprep.subr.mxu0 0.0
    %1067 = vmatpush1.msra.mxu0 0.0
    %1068 = vmatprep.subr.mxu0 0.0
    %1069 = vmatpush1.msra.mxu0 0.0
    %1070 = vmatprep.subr.mxu0 0.0
    %1071 = vmatpush1.msra.mxu0 0.0
    %1072 = vmatprep.subr.mxu0 0.0
    %v1073 = vand.u32 %v45, 4294901760
    %1074 = vmatpush1.msra.mxu0 %v1073
    %1075 = vmatprep.subr.mxu0 0.0
    %v1076 = vand.u32 %v44, 4294901760
    %1077 = vmatpush1.msra.mxu0 %v1076
    %1078 = vmatprep.subr.mxu0 0.0
    %1079 = vmatpush2.msra.mxu0 0.0
    %1080 = vmatprep.subr.mxu0 0.0
    %1081 = vmatpush2.msra.mxu0 0.0
    %1082 = vmatprep.subr.mxu0 0.0
    %1083 = vmatpush2.msra.mxu0 0.0
    %1084 = vmatprep.subr.mxu0 0.0
    %1085 = vmatpush2.msra.mxu0 0.0
    %1086 = vmatprep.subr.mxu0 0.0
    %1087 = vmatpush2.msra.mxu0 0.0
    %1088 = vmatprep.subr.mxu0 0.0
    %1089 = vmatpush2.msra.mxu0 0.0
    %1090 = vmatprep.subr.mxu0 0.0
    %1091 = vmatpush2.msra.mxu0 0.0
    %1092 = vmatprep.subr.mxu0 0.0
    %1093 = vmatpush2.msra.mxu0 0.0
    %1094 = vmatprep.subr.mxu0 0.0
    %1095 = vmatpush2.msra.mxu0 0.0
    %1096 = vmatprep.subr.mxu0 0.0
    %1097 = vmatpush2.msra.mxu0 0.0
    %1098 = vmatprep.subr.mxu0 0.0
    %1099 = vmatpush2.msra.mxu0 0.0
    %1100 = vmatprep.subr.mxu0 0.0
    %1101 = vmatpush2.msra.mxu0 0.0
    %1102 = vmatprep.subr.mxu0 0.0
    %1103 = vmatpush2.msra.mxu0 0.0
    %1104 = vmatprep.subr.mxu0 0.0
    %1105 = vmatpush2.msra.mxu0 0.0
    %1106 = vmatprep.subr.mxu0 0.0
    %1107 = vmatpush2.msra.mxu0 0.0
    %1108 = vmatprep.subr.mxu0 0.0
    %1109 = vmatpush2.msra.mxu0 0.0
    %1110 = vmatprep.mubr.f32.mxu0 0.0
    %v1111 = vand.u32 %v704, 4294901760
    %v1112 = vsub.f32 %v704, %v1111
    %v1113 = vand.u32 %v1112, 4294901760
    %1114 = vmatmul.mubr.f32.gmra.mxu0 %v1113
    %v1115 = vpop.f32.mrf.mxu0
    %v1116 = vadd.f32 %v1013, %v1115
    %v1117 = vpop.f32.mrf.mxu0
    %1118 = vmatprep.mubr.f32.mxu0 0.0
    %v1119 = vand.u32 %v707, 4294901760
    %v1120 = vsub.f32 %v707, %v1119
    %v1121 = vand.u32 %v1120, 4294901760
    %1122 = vmatmul.mubr.f32.gmra.mxu0 %v1121
    %v1123 = vpop.f32.mrf.mxu0
    %v1124 = vadd.f32 %v1020, %v1123
    %v1125 = vpop.f32.mrf.mxu0
    %1126 = vmatprep.mubr.f32.mxu0 0.0
    %v1127 = vand.u32 %v710, 4294901760
    %v1128 = vsub.f32 %v710, %v1127
    %v1129 = vand.u32 %v1128, 4294901760
    %1130 = vmatmul.mubr.f32.gmra.mxu0 %v1129
    %v1131 = vpop.f32.mrf.mxu0
    %v1132 = vadd.f32 %v1027, %v1131
    %v1133 = vpop.f32.mrf.mxu0
    %1134 = vmatprep.mubr.f32.mxu0 0.0
    %v1135 = vand.u32 %v713, 4294901760
    %v1136 = vsub.f32 %v713, %v1135
    %v1137 = vand.u32 %v1136, 4294901760
    %1138 = vmatmul.mubr.f32.gmra.mxu0 %v1137
    %v1139 = vpop.f32.mrf.mxu0
    %v1140 = vadd.f32 %v1034, %v1139
    %v1141 = vpop.f32.mrf.mxu0
    %1142 = vmatprep.mubr.f32.mxu0 0.0
    %v1143 = vand.u32 %v716, 4294901760
    %v1144 = vsub.f32 %v716, %v1143
    %v1145 = vand.u32 %v1144, 4294901760
    %1146 = vmatmul.mubr.f32.gmra.mxu0 %v1145
    %v1147 = vpop.f32.mrf.mxu0
    %v1148 = vadd.f32 %v1041, %v1147
    %v1149 = vpop.f32.mrf.mxu0
    %1150 = vdwg.mxu0
    %1151 = vmatprep.subr.mxu0 0.0
    %1152 = vmatpush1.msra.mxu0 0.0
    %1153 = vmatprep.subr.mxu0 0.0
    %1154 = vmatpush1.msra.mxu0 0.0
    %1155 = vmatprep.subr.mxu0 0.0
    %1156 = vmatpush1.msra.mxu0 0.0
    %1157 = vmatprep.subr.mxu0 0.0
    %1158 = vmatpush1.msra.mxu0 0.0
    %1159 = vmatprep.subr.mxu0 0.0
    %1160 = vmatpush1.msra.mxu0 0.0
    %1161 = vmatprep.subr.mxu0 0.0
    %1162 = vmatpush1.msra.mxu0 0.0
    %1163 = vmatprep.subr.mxu0 0.0
    %1164 = vmatpush1.msra.mxu0 0.0
    %1165 = vmatprep.subr.mxu0 0.0
    %1166 = vmatpush1.msra.mxu0 0.0
    %1167 = vmatprep.subr.mxu0 0.0
    %1168 = vmatpush1.msra.mxu0 0.0
    %1169 = vmatprep.subr.mxu0 0.0
    %1170 = vmatpush1.msra.mxu0 0.0
    %1171 = vmatprep.subr.mxu0 0.0
    %1172 = vmatpush1.msra.mxu0 0.0
    %1173 = vmatprep.subr.mxu0 0.0
    %1174 = vmatpush1.msra.mxu0 0.0
    %1175 = vmatprep.subr.mxu0 0.0
    %1176 = vmatpush1.msra.mxu0 0.0
    %1177 = vmatprep.subr.mxu0 0.0
    %1178 = vmatpush1.msra.mxu0 0.0
    %1179 = vmatprep.subr.mxu0 0.0
    %v1180 = vand.u32 %v45, 4294901760
    %v1181 = vsub.f32 %v45, %v1180
    %v1182 = vand.u32 %v1181, 4294901760
    %1183 = vmatpush1.msra.mxu0 %v1182
    %1184 = vmatprep.subr.mxu0 0.0
    %v1185 = vand.u32 %v44, 4294901760
    %v1186 = vsub.f32 %v44, %v1185
    %v1187 = vand.u32 %v1186, 4294901760
    %1188 = vmatpush1.msra.mxu0 %v1187
    %1189 = vmatprep.subr.mxu0 0.0
    %1190 = vmatpush2.msra.mxu0 0.0
    %1191 = vmatprep.subr.mxu0 0.0
    %1192 = vmatpush2.msra.mxu0 0.0
    %1193 = vmatprep.subr.mxu0 0.0
    %1194 = vmatpush2.msra.mxu0 0.0
    %1195 = vmatprep.subr.mxu0 0.0
    %1196 = vmatpush2.msra.mxu0 0.0
    %1197 = vmatprep.subr.mxu0 0.0
    %1198 = vmatpush2.msra.mxu0 0.0
    %1199 = vmatprep.subr.mxu0 0.0
    %1200 = vmatpush2.msra.mxu0 0.0
    %1201 = vmatprep.subr.mxu0 0.0
    %1202 = vmatpush2.msra.mxu0 0.0
    %1203 = vmatprep.subr.mxu0 0.0
    %1204 = vmatpush2.msra.mxu0 0.0
    %1205 = vmatprep.subr.mxu0 0.0
    %1206 = vmatpush2.msra.mxu0 0.0
    %1207 = vmatprep.subr.mxu0 0.0
    %1208 = vmatpush2.msra.mxu0 0.0
    %1209 = vmatprep.subr.mxu0 0.0
    %1210 = vmatpush2.msra.mxu0 0.0
    %1211 = vmatprep.subr.mxu0 0.0
    %1212 = vmatpush2.msra.mxu0 0.0
    %1213 = vmatprep.subr.mxu0 0.0
    %1214 = vmatpush2.msra.mxu0 0.0
    %1215 = vmatprep.subr.mxu0 0.0
    %1216 = vmatpush2.msra.mxu0 0.0
    %1217 = vmatprep.subr.mxu0 0.0
    %1218 = vmatpush2.msra.mxu0 0.0
    %1219 = vmatprep.subr.mxu0 0.0
    %1220 = vmatpush2.msra.mxu0 0.0
    %1221 = vmatprep.mubr.f32.mxu0 0.0
    %v1222 = vand.u32 %v704, 4294901760
    %1223 = vmatmul.mubr.f32.gmra.mxu0 %v1222
    %v1224 = vpop.f32.mrf.mxu0
    %v1225 = vadd.f32 %v1116, %v1224
    %v1226 = vpop.f32.mrf.mxu0
    %1227 = vmatprep.mubr.f32.mxu0 0.0
    %v1228 = vand.u32 %v707, 4294901760
    %1229 = vmatmul.mubr.f32.gmra.mxu0 %v1228
    %v1230 = vpop.f32.mrf.mxu0
    %v1231 = vadd.f32 %v1124, %v1230
    %v1232 = vpop.f32.mrf.mxu0
    %1233 = vmatprep.mubr.f32.mxu0 0.0
    %v1234 = vand.u32 %v710, 4294901760
    %1235 = vmatmul.mubr.f32.gmra.mxu0 %v1234
    %v1236 = vpop.f32.mrf.mxu0
    %v1237 = vadd.f32 %v1132, %v1236
    %v1238 = vpop.f32.mrf.mxu0
    %1239 = vmatprep.mubr.f32.mxu0 0.0
    %v1240 = vand.u32 %v713, 4294901760
    %1241 = vmatmul.mubr.f32.gmra.mxu0 %v1240
    %v1242 = vpop.f32.mrf.mxu0
    %v1243 = vadd.f32 %v1140, %v1242
    %v1244 = vpop.f32.mrf.mxu0
    %1245 = vmatprep.mubr.f32.mxu0 0.0
    %v1246 = vand.u32 %v716, 4294901760
    %1247 = vmatmul.mubr.f32.gmra.mxu0 %v1246
    %v1248 = vpop.f32.mrf.mxu0
    %v1249 = vadd.f32 %v1148, %v1248
    %v1250 = vpop.f32.mrf.mxu0
    %1251 = vdwg.mxu0
    %1252 = vmatprep.subr.mxu0 0.0
    %1253 = vmatpush1.msra.mxu0 0.0
    %1254 = vmatprep.subr.mxu0 0.0
    %1255 = vmatpush1.msra.mxu0 0.0
    %1256 = vmatprep.subr.mxu0 0.0
    %1257 = vmatpush1.msra.mxu0 0.0
    %1258 = vmatprep.subr.mxu0 0.0
    %1259 = vmatpush1.msra.mxu0 0.0
    %1260 = vmatprep.subr.mxu0 0.0
    %1261 = vmatpush1.msra.mxu0 0.0
    %1262 = vmatprep.subr.mxu0 0.0
    %1263 = vmatpush1.msra.mxu0 0.0
    %1264 = vmatprep.subr.mxu0 0.0
    %1265 = vmatpush1.msra.mxu0 0.0
    %1266 = vmatprep.subr.mxu0 0.0
    %1267 = vmatpush1.msra.mxu0 0.0
    %1268 = vmatprep.subr.mxu0 0.0
    %1269 = vmatpush1.msra.mxu0 0.0
    %1270 = vmatprep.subr.mxu0 0.0
    %1271 = vmatpush1.msra.mxu0 0.0
    %1272 = vmatprep.subr.mxu0 0.0
    %1273 = vmatpush1.msra.mxu0 0.0
    %1274 = vmatprep.subr.mxu0 0.0
    %1275 = vmatpush1.msra.mxu0 0.0
    %1276 = vmatprep.subr.mxu0 0.0
    %1277 = vmatpush1.msra.mxu0 0.0
    %1278 = vmatprep.subr.mxu0 0.0
    %1279 = vmatpush1.msra.mxu0 0.0
    %1280 = vmatprep.subr.mxu0 0.0
    %v1281 = vand.u32 %v45, 4294901760
    %1282 = vmatpush1.msra.mxu0 %v1281
    %1283 = vmatprep.subr.mxu0 0.0
    %v1284 = vand.u32 %v44, 4294901760
    %1285 = vmatpush1.msra.mxu0 %v1284
    %1286 = vmatprep.subr.mxu0 0.0
    %1287 = vmatpush2.msra.mxu0 0.0
    %1288 = vmatprep.subr.mxu0 0.0
    %1289 = vmatpush2.msra.mxu0 0.0
    %1290 = vmatprep.subr.mxu0 0.0
    %1291 = vmatpush2.msra.mxu0 0.0
    %1292 = vmatprep.subr.mxu0 0.0
    %1293 = vmatpush2.msra.mxu0 0.0
    %1294 = vmatprep.subr.mxu0 0.0
    %1295 = vmatpush2.msra.mxu0 0.0
    %1296 = vmatprep.subr.mxu0 0.0
    %1297 = vmatpush2.msra.mxu0 0.0
    %1298 = vmatprep.subr.mxu0 0.0
    %1299 = vmatpush2.msra.mxu0 0.0
    %1300 = vmatprep.subr.mxu0 0.0
    %1301 = vmatpush2.msra.mxu0 0.0
    %1302 = vmatprep.subr.mxu0 0.0
    %1303 = vmatpush2.msra.mxu0 0.0
    %1304 = vmatprep.subr.mxu0 0.0
    %1305 = vmatpush2.msra.mxu0 0.0
    %1306 = vmatprep.subr.mxu0 0.0
    %1307 = vmatpush2.msra.mxu0 0.0
    %1308 = vmatprep.subr.mxu0 0.0
    %1309 = vmatpush2.msra.mxu0 0.0
    %1310 = vmatprep.subr.mxu0 0.0
    %1311 = vmatpush2.msra.mxu0 0.0
    %1312 = vmatprep.subr.mxu0 0.0
    %1313 = vmatpush2.msra.mxu0 0.0
    %1314 = vmatprep.subr.mxu0 0.0
    %1315 = vmatpush2.msra.mxu0 0.0
    %1316 = vmatprep.subr.mxu0 0.0
    %1317 = vmatpush2.msra.mxu0 0.0
    %1318 = vmatprep.mubr.f32.mxu0 0.0
    %v1319 = vand.u32 %v704, 4294901760
    %1320 = vmatmul.mubr.f32.gmra.mxu0 %v1319
    %v1321 = vpop.f32.mrf.mxu0
    %v1322 = vadd.f32 %v1225, %v1321
    %v1323 = vpop.f32.mrf.mxu0
    %1324 = vmatprep.mubr.f32.mxu0 0.0
    %v1325 = vand.u32 %v707, 4294901760
    %1326 = vmatmul.mubr.f32.gmra.mxu0 %v1325
    %v1327 = vpop.f32.mrf.mxu0
    %v1328 = vadd.f32 %v1231, %v1327
    %v1329 = vpop.f32.mrf.mxu0
    %1330 = vmatprep.mubr.f32.mxu0 0.0
    %v1331 = vand.u32 %v710, 4294901760
    %1332 = vmatmul.mubr.f32.gmra.mxu0 %v1331
    %v1333 = vpop.f32.mrf.mxu0
    %v1334 = vadd.f32 %v1237, %v1333
    %v1335 = vpop.f32.mrf.mxu0
    %1336 = vmatprep.mubr.f32.mxu0 0.0
    %v1337 = vand.u32 %v713, 4294901760
    %1338 = vmatmul.mubr.f32.gmra.mxu0 %v1337
    %v1339 = vpop.f32.mrf.mxu0
    %v1340 = vadd.f32 %v1243, %v1339
    %v1341 = vpop.f32.mrf.mxu0
    %1342 = vmatprep.mubr.f32.mxu0 0.0
    %v1343 = vand.u32 %v716, 4294901760
    %1344 = vmatmul.mubr.f32.gmra.mxu0 %v1343
    %v1345 = vpop.f32.mrf.mxu0
    %v1346 = vadd.f32 %v1249, %v1345
    %v1347 = vpop.f32.mrf.mxu0
    %1348 = vdwg.mxu0
    %v1349 = vld [vmem:[%s4] sm:$0xff]
    %v1350 = vld [vmem:[%s4 + $0x8] sm:$0xff]
    %v1351 = vld [vmem:[%s4 + $0x10] sm:$0xff]
    %v1352 = vld [vmem:[%s4 + $0x18] sm:$0xff]
    %v1353 = vld [vmem:[%s4 + $0x20] sm:$0xff]
    %vm1354 = vcmask 326656
    %v1356 = vsel %vm1354, %v1349, 0
    %v1359 = vsel %vm1354, %v1350, 0
    %v1362 = vsel %vm1354, %v1351, 0
    %v1365 = vsel %vm1354, %v1352, 0
    %v1368 = vsel %vm1354, %v1353, 0
    %1370 = vmatprep.subr.mxu0 0.0
    %1371 = vmatpush1.msra.mxu0 0.0
    %1372 = vmatprep.subr.mxu0 0.0
    %1373 = vmatpush1.msra.mxu0 0.0
    %1374 = vmatprep.subr.mxu0 0.0
    %1375 = vmatpush1.msra.mxu0 0.0
    %1376 = vmatprep.subr.mxu0 0.0
    %1377 = vmatpush1.msra.mxu0 0.0
    %1378 = vmatprep.subr.mxu0 0.0
    %1379 = vmatpush1.msra.mxu0 0.0
    %1380 = vmatprep.subr.mxu0 0.0
    %1381 = vmatpush1.msra.mxu0 0.0
    %1382 = vmatprep.subr.mxu0 0.0
    %1383 = vmatpush1.msra.mxu0 0.0
    %1384 = vmatprep.subr.mxu0 0.0
    %1385 = vmatpush1.msra.mxu0 0.0
    %1386 = vmatprep.subr.mxu0 0.0
    %1387 = vmatpush1.msra.mxu0 0.0
    %1388 = vmatprep.subr.mxu0 0.0
    %1389 = vmatpush1.msra.mxu0 0.0
    %1390 = vmatprep.subr.mxu0 0.0
    %1391 = vmatpush1.msra.mxu0 0.0
    %1392 = vmatprep.subr.mxu0 0.0
    %v1393 = vand.u32 %v695, 4294901760
    %1394 = vmatpush1.msra.mxu0 %v1393
    %1395 = vmatprep.subr.mxu0 0.0
    %v1396 = vand.u32 %v689, 4294901760
    %1397 = vmatpush1.msra.mxu0 %v1396
    %1398 = vmatprep.subr.mxu0 0.0
    %v1399 = vand.u32 %v683, 4294901760
    %1400 = vmatpush1.msra.mxu0 %v1399
    %1401 = vmatprep.subr.mxu0 0.0
    %v1402 = vand.u32 %v677, 4294901760
    %1403 = vmatpush1.msra.mxu0 %v1402
    %1404 = vmatprep.subr.mxu0 0.0
    %v1405 = vand.u32 %v671, 4294901760
    %1406 = vmatpush1.msra.mxu0 %v1405
    %1407 = vmatprep.subr.mxu0 0.0
    %1408 = vmatpush2.msra.mxu0 0.0
    %1409 = vmatprep.subr.mxu0 0.0
    %1410 = vmatpush2.msra.mxu0 0.0
    %1411 = vmatprep.subr.mxu0 0.0
    %1412 = vmatpush2.msra.mxu0 0.0
    %1413 = vmatprep.subr.mxu0 0.0
    %1414 = vmatpush2.msra.mxu0 0.0
    %1415 = vmatprep.subr.mxu0 0.0
    %1416 = vmatpush2.msra.mxu0 0.0
    %1417 = vmatprep.subr.mxu0 0.0
    %1418 = vmatpush2.msra.mxu0 0.0
    %1419 = vmatprep.subr.mxu0 0.0
    %1420 = vmatpush2.msra.mxu0 0.0
    %1421 = vmatprep.subr.mxu0 0.0
    %1422 = vmatpush2.msra.mxu0 0.0
    %1423 = vmatprep.subr.mxu0 0.0
    %1424 = vmatpush2.msra.mxu0 0.0
    %1425 = vmatprep.subr.mxu0 0.0
    %1426 = vmatpush2.msra.mxu0 0.0
    %1427 = vmatprep.subr.mxu0 0.0
    %1428 = vmatpush2.msra.mxu0 0.0
    %1429 = vmatprep.subr.mxu0 0.0
    %1430 = vmatpush2.msra.mxu0 0.0
    %1431 = vmatprep.subr.mxu0 0.0
    %1432 = vmatpush2.msra.mxu0 0.0
    %1433 = vmatprep.subr.mxu0 0.0
    %1434 = vmatpush2.msra.mxu0 0.0
    %1435 = vmatprep.subr.mxu0 0.0
    %1436 = vmatpush2.msra.mxu0 0.0
    %1437 = vmatprep.subr.mxu0 0.0
    %1438 = vmatpush2.msra.mxu0 0.0
    %1439 = vmatprep.mubr.f32.mxu0 0.0
    %v1440 = vand.u32 %v1356, 4294901760
    %v1441 = vsub.f32 %v1356, %v1440
    %v1442 = vand.u32 %v1441, 4294901760
    %v1443 = vsub.f32 %v1441, %v1442
    %v1444 = vand.u32 %v1443, 4294901760
    %1445 = vmatmul.mubr.f32.gmra.mxu0 %v1444
    %v1446 = vpop.f32.mrf.mxu0
    %v1447 = vadd.f32 0.0, %v1446
    %v1448 = vpop.f32.mrf.mxu0
    %1449 = vmatprep.mubr.f32.mxu0 0.0
    %v1450 = vand.u32 %v1359, 4294901760
    %v1451 = vsub.f32 %v1359, %v1450
    %v1452 = vand.u32 %v1451, 4294901760
    %v1453 = vsub.f32 %v1451, %v1452
    %v1454 = vand.u32 %v1453, 4294901760
    %1455 = vmatmul.mubr.f32.gmra.mxu0 %v1454
    %v1456 = vpop.f32.mrf.mxu0
    %v1457 = vadd.f32 0.0, %v1456
    %v1458 = vpop.f32.mrf.mxu0
    %1459 = vmatprep.mubr.f32.mxu0 0.0
    %v1460 = vand.u32 %v1362, 4294901760
    %v1461 = vsub.f32 %v1362, %v1460
    %v1462 = vand.u32 %v1461, 4294901760
    %v1463 = vsub.f32 %v1461, %v1462
    %v1464 = vand.u32 %v1463, 4294901760
    %1465 = vmatmul.mubr.f32.gmra.mxu0 %v1464
    %v1466 = vpop.f32.mrf.mxu0
    %v1467 = vadd.f32 0.0, %v1466
    %v1468 = vpop.f32.mrf.mxu0
    %1469 = vmatprep.mubr.f32.mxu0 0.0
    %v1470 = vand.u32 %v1365, 4294901760
    %v1471 = vsub.f32 %v1365, %v1470
    %v1472 = vand.u32 %v1471, 4294901760
    %v1473 = vsub.f32 %v1471, %v1472
    %v1474 = vand.u32 %v1473, 4294901760
    %1475 = vmatmul.mubr.f32.gmra.mxu0 %v1474
    %v1476 = vpop.f32.mrf.mxu0
    %v1477 = vadd.f32 0.0, %v1476
    %v1478 = vpop.f32.mrf.mxu0
    %1479 = vmatprep.mubr.f32.mxu0 0.0
    %v1480 = vand.u32 %v1368, 4294901760
    %v1481 = vsub.f32 %v1368, %v1480
    %v1482 = vand.u32 %v1481, 4294901760
    %v1483 = vsub.f32 %v1481, %v1482
    %v1484 = vand.u32 %v1483, 4294901760
    %1485 = vmatmul.mubr.f32.gmra.mxu0 %v1484
    %v1486 = vpop.f32.mrf.mxu0
    %v1487 = vadd.f32 0.0, %v1486
    %v1488 = vpop.f32.mrf.mxu0
    %1489 = vdwg.mxu0
    %1490 = vmatprep.subr.mxu0 0.0
    %1491 = vmatpush1.msra.mxu0 0.0
    %1492 = vmatprep.subr.mxu0 0.0
    %1493 = vmatpush1.msra.mxu0 0.0
    %1494 = vmatprep.subr.mxu0 0.0
    %1495 = vmatpush1.msra.mxu0 0.0
    %1496 = vmatprep.subr.mxu0 0.0
    %1497 = vmatpush1.msra.mxu0 0.0
    %1498 = vmatprep.subr.mxu0 0.0
    %1499 = vmatpush1.msra.mxu0 0.0
    %1500 = vmatprep.subr.mxu0 0.0
    %1501 = vmatpush1.msra.mxu0 0.0
    %1502 = vmatprep.subr.mxu0 0.0
    %1503 = vmatpush1.msra.mxu0 0.0
    %1504 = vmatprep.subr.mxu0 0.0
    %1505 = vmatpush1.msra.mxu0 0.0
    %1506 = vmatprep.subr.mxu0 0.0
    %1507 = vmatpush1.msra.mxu0 0.0
    %1508 = vmatprep.subr.mxu0 0.0
    %1509 = vmatpush1.msra.mxu0 0.0
    %1510 = vmatprep.subr.mxu0 0.0
    %1511 = vmatpush1.msra.mxu0 0.0
    %1512 = vmatprep.subr.mxu0 0.0
    %v1513 = vand.u32 %v695, 4294901760
    %v1514 = vsub.f32 %v695, %v1513
    %v1515 = vand.u32 %v1514, 4294901760
    %v1516 = vsub.f32 %v1514, %v1515
    %v1517 = vand.u32 %v1516, 4294901760
    %1518 = vmatpush1.msra.mxu0 %v1517
    %1519 = vmatprep.subr.mxu0 0.0
    %v1520 = vand.u32 %v689, 4294901760
    %v1521 = vsub.f32 %v689, %v1520
    %v1522 = vand.u32 %v1521, 4294901760
    %v1523 = vsub.f32 %v1521, %v1522
    %v1524 = vand.u32 %v1523, 4294901760
    %1525 = vmatpush1.msra.mxu0 %v1524
    %1526 = vmatprep.subr.mxu0 0.0
    %v1527 = vand.u32 %v683, 4294901760
    %v1528 = vsub.f32 %v683, %v1527
    %v1529 = vand.u32 %v1528, 4294901760
    %v1530 = vsub.f32 %v1528, %v1529
    %v1531 = vand.u32 %v1530, 4294901760
    %1532 = vmatpush1.msra.mxu0 %v1531
    %1533 = vmatprep.subr.mxu0 0.0
    %v1534 = vand.u32 %v677, 4294901760
    %v1535 = vsub.f32 %v677, %v1534
    %v1536 = vand.u32 %v1535, 4294901760
    %v1537 = vsub.f32 %v1535, %v1536
    %v1538 = vand.u32 %v1537, 4294901760
    %1539 = vmatpush1.msra.mxu0 %v1538
    %1540 = vmatprep.subr.mxu0 0.0
    %v1541 = vand.u32 %v671, 4294901760
    %v1542 = vsub.f32 %v671, %v1541
    %v1543 = vand.u32 %v1542, 4294901760
    %v1544 = vsub.f32 %v1542, %v1543
    %v1545 = vand.u32 %v1544, 4294901760
    %1546 = vmatpush1.msra.mxu0 %v1545
    %1547 = vmatprep.subr.mxu0 0.0
    %1548 = vmatpush2.msra.mxu0 0.0
    %1549 = vmatprep.subr.mxu0 0.0
    %1550 = vmatpush2.msra.mxu0 0.0
    %1551 = vmatprep.subr.mxu0 0.0
    %1552 = vmatpush2.msra.mxu0 0.0
    %1553 = vmatprep.subr.mxu0 0.0
    %1554 = vmatpush2.msra.mxu0 0.0
    %1555 = vmatprep.subr.mxu0 0.0
    %1556 = vmatpush2.msra.mxu0 0.0
    %1557 = vmatprep.subr.mxu0 0.0
    %1558 = vmatpush2.msra.mxu0 0.0
    %1559 = vmatprep.subr.mxu0 0.0
    %1560 = vmatpush2.msra.mxu0 0.0
    %1561 = vmatprep.subr.mxu0 0.0
    %1562 = vmatpush2.msra.mxu0 0.0
    %1563 = vmatprep.subr.mxu0 0.0
    %1564 = vmatpush2.msra.mxu0 0.0
    %1565 = vmatprep.subr.mxu0 0.0
    %1566 = vmatpush2.msra.mxu0 0.0
    %1567 = vmatprep.subr.mxu0 0.0
    %1568 = vmatpush2.msra.mxu0 0.0
    %1569 = vmatprep.subr.mxu0 0.0
    %1570 = vmatpush2.msra.mxu0 0.0
    %1571 = vmatprep.subr.mxu0 0.0
    %1572 = vmatpush2.msra.mxu0 0.0
    %1573 = vmatprep.subr.mxu0 0.0
    %1574 = vmatpush2.msra.mxu0 0.0
    %1575 = vmatprep.subr.mxu0 0.0
    %1576 = vmatpush2.msra.mxu0 0.0
    %1577 = vmatprep.subr.mxu0 0.0
    %1578 = vmatpush2.msra.mxu0 0.0
    %1579 = vmatprep.mubr.f32.mxu0 0.0
    %v1580 = vand.u32 %v1356, 4294901760
    %1581 = vmatmul.mubr.f32.gmra.mxu0 %v1580
    %v1582 = vpop.f32.mrf.mxu0
    %v1583 = vadd.f32 %v1447, %v1582
    %v1584 = vpop.f32.mrf.mxu0
    %1585 = vmatprep.mubr.f32.mxu0 0.0
    %v1586 = vand.u32 %v1359, 4294901760
    %1587 = vmatmul.mubr.f32.gmra.mxu0 %v1586
    %v1588 = vpop.f32.mrf.mxu0
    %v1589 = vadd.f32 %v1457, %v1588
    %v1590 = vpop.f32.mrf.mxu0
    %1591 = vmatprep.mubr.f32.mxu0 0.0
    %v1592 = vand.u32 %v1362, 4294901760
    %1593 = vmatmul.mubr.f32.gmra.mxu0 %v1592
    %v1594 = vpop.f32.mrf.mxu0
    %v1595 = vadd.f32 %v1467, %v1594
    %v1596 = vpop.f32.mrf.mxu0
    %1597 = vmatprep.mubr.f32.mxu0 0.0
    %v1598 = vand.u32 %v1365, 4294901760
    %1599 = vmatmul.mubr.f32.gmra.mxu0 %v1598
    %v1600 = vpop.f32.mrf.mxu0
    %v1601 = vadd.f32 %v1477, %v1600
    %v1602 = vpop.f32.mrf.mxu0
    %1603 = vmatprep.mubr.f32.mxu0 0.0
    %v1604 = vand.u32 %v1368, 4294901760
    %1605 = vmatmul.mubr.f32.gmra.mxu0 %v1604
    %v1606 = vpop.f32.mrf.mxu0
    %v1607 = vadd.f32 %v1487, %v1606
    %v1608 = vpop.f32.mrf.mxu0
    %1609 = vdwg.mxu0
    %1610 = vmatprep.subr.mxu0 0.0
    %1611 = vmatpush1.msra.mxu0 0.0
    %1612 = vmatprep.subr.mxu0 0.0
    %1613 = vmatpush1.msra.mxu0 0.0
    %1614 = vmatprep.subr.mxu0 0.0
    %1615 = vmatpush1.msra.mxu0 0.0
    %1616 = vmatprep.subr.mxu0 0.0
    %1617 = vmatpush1.msra.mxu0 0.0
    %1618 = vmatprep.subr.mxu0 0.0
    %1619 = vmatpush1.msra.mxu0 0.0
    %1620 = vmatprep.subr.mxu0 0.0
    %1621 = vmatpush1.msra.mxu0 0.0
    %1622 = vmatprep.subr.mxu0 0.0
    %1623 = vmatpush1.msra.mxu0 0.0
    %1624 = vmatprep.subr.mxu0 0.0
    %1625 = vmatpush1.msra.mxu0 0.0
    %1626 = vmatprep.subr.mxu0 0.0
    %1627 = vmatpush1.msra.mxu0 0.0
    %1628 = vmatprep.subr.mxu0 0.0
    %1629 = vmatpush1.msra.mxu0 0.0
    %1630 = vmatprep.subr.mxu0 0.0
    %1631 = vmatpush1.msra.mxu0 0.0
    %1632 = vmatprep.subr.mxu0 0.0
    %v1633 = vand.u32 %v695, 4294901760
    %v1634 = vsub.f32 %v695, %v1633
    %1635 = vmatpush1.msra.mxu0 %v1634
    %1636 = vmatprep.subr.mxu0 0.0
    %v1637 = vand.u32 %v689, 4294901760
    %v1638 = vsub.f32 %v689, %v1637
    %1639 = vmatpush1.msra.mxu0 %v1638
    %1640 = vmatprep.subr.mxu0 0.0
    %v1641 = vand.u32 %v683, 4294901760
    %v1642 = vsub.f32 %v683, %v1641
    %1643 = vmatpush1.msra.mxu0 %v1642
    %1644 = vmatprep.subr.mxu0 0.0
    %v1645 = vand.u32 %v677, 4294901760
    %v1646 = vsub.f32 %v677, %v1645
    %1647 = vmatpush1.msra.mxu0 %v1646
    %1648 = vmatprep.subr.mxu0 0.0
    %v1649 = vand.u32 %v671, 4294901760
    %v1650 = vsub.f32 %v671, %v1649
    %1651 = vmatpush1.msra.mxu0 %v1650
    %1652 = vmatprep.subr.mxu0 0.0
    %1653 = vmatpush2.msra.mxu0 0.0
    %1654 = vmatprep.subr.mxu0 0.0
    %1655 = vmatpush2.msra.mxu0 0.0
    %1656 = vmatprep.subr.mxu0 0.0
    %1657 = vmatpush2.msra.mxu0 0.0
    %1658 = vmatprep.subr.mxu0 0.0
    %1659 = vmatpush2.msra.mxu0 0.0
    %1660 = vmatprep.subr.mxu0 0.0
    %1661 = vmatpush2.msra.mxu0 0.0
    %1662 = vmatprep.subr.mxu0 0.0
    %1663 = vmatpush2.msra.mxu0 0.0
    %1664 = vmatprep.subr.mxu0 0.0
    %1665 = vmatpush2.msra.mxu0 0.0
    %1666 = vmatprep.subr.mxu0 0.0
    %1667 = vmatpush2.msra.mxu0 0.0
    %1668 = vmatprep.subr.mxu0 0.0
    %1669 = vmatpush2.msra.mxu0 0.0
    %1670 = vmatprep.subr.mxu0 0.0
    %1671 = vmatpush2.msra.mxu0 0.0
    %1672 = vmatprep.subr.mxu0 0.0
    %1673 = vmatpush2.msra.mxu0 0.0
    %1674 = vmatprep.subr.mxu0 0.0
    %1675 = vmatpush2.msra.mxu0 0.0
    %1676 = vmatprep.subr.mxu0 0.0
    %1677 = vmatpush2.msra.mxu0 0.0
    %1678 = vmatprep.subr.mxu0 0.0
    %1679 = vmatpush2.msra.mxu0 0.0
    %1680 = vmatprep.subr.mxu0 0.0
    %1681 = vmatpush2.msra.mxu0 0.0
    %1682 = vmatprep.subr.mxu0 0.0
    %1683 = vmatpush2.msra.mxu0 0.0
    %1684 = vmatprep.mubr.f32.mxu0 0.0
    %v1685 = vand.u32 %v1356, 4294901760
    %v1686 = vsub.f32 %v1356, %v1685
    %1687 = vmatmul.mubr.f32.gmra.mxu0 %v1686
    %v1688 = vpop.f32.mrf.mxu0
    %v1689 = vadd.f32 %v1583, %v1688
    %v1690 = vpop.f32.mrf.mxu0
    %1691 = vmatprep.mubr.f32.mxu0 0.0
    %v1692 = vand.u32 %v1359, 4294901760
    %v1693 = vsub.f32 %v1359, %v1692
    %1694 = vmatmul.mubr.f32.gmra.mxu0 %v1693
    %v1695 = vpop.f32.mrf.mxu0
    %v1696 = vadd.f32 %v1589, %v1695
    %v1697 = vpop.f32.mrf.mxu0
    %1698 = vmatprep.mubr.f32.mxu0 0.0
    %v1699 = vand.u32 %v1362, 4294901760
    %v1700 = vsub.f32 %v1362, %v1699
    %1701 = vmatmul.mubr.f32.gmra.mxu0 %v1700
    %v1702 = vpop.f32.mrf.mxu0
    %v1703 = vadd.f32 %v1595, %v1702
    %v1704 = vpop.f32.mrf.mxu0
    %1705 = vmatprep.mubr.f32.mxu0 0.0
    %v1706 = vand.u32 %v1365, 4294901760
    %v1707 = vsub.f32 %v1365, %v1706
    %1708 = vmatmul.mubr.f32.gmra.mxu0 %v1707
    %v1709 = vpop.f32.mrf.mxu0
    %v1710 = vadd.f32 %v1601, %v1709
    %v1711 = vpop.f32.mrf.mxu0
    %1712 = vmatprep.mubr.f32.mxu0 0.0
    %v1713 = vand.u32 %v1368, 4294901760
    %v1714 = vsub.f32 %v1368, %v1713
    %1715 = vmatmul.mubr.f32.gmra.mxu0 %v1714
    %v1716 = vpop.f32.mrf.mxu0
    %v1717 = vadd.f32 %v1607, %v1716
    %v1718 = vpop.f32.mrf.mxu0
    %1719 = vdwg.mxu0
    %1720 = vmatprep.subr.mxu0 0.0
    %1721 = vmatpush1.msra.mxu0 0.0
    %1722 = vmatprep.subr.mxu0 0.0
    %1723 = vmatpush1.msra.mxu0 0.0
    %1724 = vmatprep.subr.mxu0 0.0
    %1725 = vmatpush1.msra.mxu0 0.0
    %1726 = vmatprep.subr.mxu0 0.0
    %1727 = vmatpush1.msra.mxu0 0.0
    %1728 = vmatprep.subr.mxu0 0.0
    %1729 = vmatpush1.msra.mxu0 0.0
    %1730 = vmatprep.subr.mxu0 0.0
    %1731 = vmatpush1.msra.mxu0 0.0
    %1732 = vmatprep.subr.mxu0 0.0
    %1733 = vmatpush1.msra.mxu0 0.0
    %1734 = vmatprep.subr.mxu0 0.0
    %1735 = vmatpush1.msra.mxu0 0.0
    %1736 = vmatprep.subr.mxu0 0.0
    %1737 = vmatpush1.msra.mxu0 0.0
    %1738 = vmatprep.subr.mxu0 0.0
    %1739 = vmatpush1.msra.mxu0 0.0
    %1740 = vmatprep.subr.mxu0 0.0
    %1741 = vmatpush1.msra.mxu0 0.0
    %1742 = vmatprep.subr.mxu0 0.0
    %v1743 = vand.u32 %v695, 4294901760
    %1744 = vmatpush1.msra.mxu0 %v1743
    %1745 = vmatprep.subr.mxu0 0.0
    %v1746 = vand.u32 %v689, 4294901760
    %1747 = vmatpush1.msra.mxu0 %v1746
    %1748 = vmatprep.subr.mxu0 0.0
    %v1749 = vand.u32 %v683, 4294901760
    %1750 = vmatpush1.msra.mxu0 %v1749
    %1751 = vmatprep.subr.mxu0 0.0
    %v1752 = vand.u32 %v677, 4294901760
    %1753 = vmatpush1.msra.mxu0 %v1752
    %1754 = vmatprep.subr.mxu0 0.0
    %v1755 = vand.u32 %v671, 4294901760
    %1756 = vmatpush1.msra.mxu0 %v1755
    %1757 = vmatprep.subr.mxu0 0.0
    %1758 = vmatpush2.msra.mxu0 0.0
    %1759 = vmatprep.subr.mxu0 0.0
    %1760 = vmatpush2.msra.mxu0 0.0
    %1761 = vmatprep.subr.mxu0 0.0
    %1762 = vmatpush2.msra.mxu0 0.0
    %1763 = vmatprep.subr.mxu0 0.0
    %1764 = vmatpush2.msra.mxu0 0.0
    %1765 = vmatprep.subr.mxu0 0.0
    %1766 = vmatpush2.msra.mxu0 0.0
    %1767 = vmatprep.subr.mxu0 0.0
    %1768 = vmatpush2.msra.mxu0 0.0
    %1769 = vmatprep.subr.mxu0 0.0
    %1770 = vmatpush2.msra.mxu0 0.0
    %1771 = vmatprep.subr.mxu0 0.0
    %1772 = vmatpush2.msra.mxu0 0.0
    %1773 = vmatprep.subr.mxu0 0.0
    %1774 = vmatpush2.msra.mxu0 0.0
    %1775 = vmatprep.subr.mxu0 0.0
    %1776 = vmatpush2.msra.mxu0 0.0
    %1777 = vmatprep.subr.mxu0 0.0
    %1778 = vmatpush2.msra.mxu0 0.0
    %1779 = vmatprep.subr.mxu0 0.0
    %1780 = vmatpush2.msra.mxu0 0.0
    %1781 = vmatprep.subr.mxu0 0.0
    %1782 = vmatpush2.msra.mxu0 0.0
    %1783 = vmatprep.subr.mxu0 0.0
    %1784 = vmatpush2.msra.mxu0 0.0
    %1785 = vmatprep.subr.mxu0 0.0
    %1786 = vmatpush2.msra.mxu0 0.0
    %1787 = vmatprep.subr.mxu0 0.0
    %1788 = vmatpush2.msra.mxu0 0.0
    %1789 = vmatprep.mubr.f32.mxu0 0.0
    %v1790 = vand.u32 %v1356, 4294901760
    %v1791 = vsub.f32 %v1356, %v1790
    %v1792 = vand.u32 %v1791, 4294901760
    %1793 = vmatmul.mubr.f32.gmra.mxu0 %v1792
    %v1794 = vpop.f32.mrf.mxu0
    %v1795 = vadd.f32 %v1689, %v1794
    %v1796 = vpop.f32.mrf.mxu0
    %1797 = vmatprep.mubr.f32.mxu0 0.0
    %v1798 = vand.u32 %v1359, 4294901760
    %v1799 = vsub.f32 %v1359, %v1798
    %v1800 = vand.u32 %v1799, 4294901760
    %1801 = vmatmul.mubr.f32.gmra.mxu0 %v1800
    %v1802 = vpop.f32.mrf.mxu0
    %v1803 = vadd.f32 %v1696, %v1802
    %v1804 = vpop.f32.mrf.mxu0
    %1805 = vmatprep.mubr.f32.mxu0 0.0
    %v1806 = vand.u32 %v1362, 4294901760
    %v1807 = vsub.f32 %v1362, %v1806
    %v1808 = vand.u32 %v1807, 4294901760
    %1809 = vmatmul.mubr.f32.gmra.mxu0 %v1808
    %v1810 = vpop.f32.mrf.mxu0
    %v1811 = vadd.f32 %v1703, %v1810
    %v1812 = vpop.f32.mrf.mxu0
    %1813 = vmatprep.mubr.f32.mxu0 0.0
    %v1814 = vand.u32 %v1365, 4294901760
    %v1815 = vsub.f32 %v1365, %v1814
    %v1816 = vand.u32 %v1815, 4294901760
    %1817 = vmatmul.mubr.f32.gmra.mxu0 %v1816
    %v1818 = vpop.f32.mrf.mxu0
    %v1819 = vadd.f32 %v1710, %v1818
    %v1820 = vpop.f32.mrf.mxu0
    %1821 = vmatprep.mubr.f32.mxu0 0.0
    %v1822 = vand.u32 %v1368, 4294901760
    %v1823 = vsub.f32 %v1368, %v1822
    %v1824 = vand.u32 %v1823, 4294901760
    %1825 = vmatmul.mubr.f32.gmra.mxu0 %v1824
    %v1826 = vpop.f32.mrf.mxu0
    %v1827 = vadd.f32 %v1717, %v1826
    %v1828 = vpop.f32.mrf.mxu0
    %1829 = vdwg.mxu0
    %1830 = vmatprep.subr.mxu0 0.0
    %1831 = vmatpush1.msra.mxu0 0.0
    %1832 = vmatprep.subr.mxu0 0.0
    %1833 = vmatpush1.msra.mxu0 0.0
    %1834 = vmatprep.subr.mxu0 0.0
    %1835 = vmatpush1.msra.mxu0 0.0
    %1836 = vmatprep.subr.mxu0 0.0
    %1837 = vmatpush1.msra.mxu0 0.0
    %1838 = vmatprep.subr.mxu0 0.0
    %1839 = vmatpush1.msra.mxu0 0.0
    %1840 = vmatprep.subr.mxu0 0.0
    %1841 = vmatpush1.msra.mxu0 0.0
    %1842 = vmatprep.subr.mxu0 0.0
    %1843 = vmatpush1.msra.mxu0 0.0
    %1844 = vmatprep.subr.mxu0 0.0
    %1845 = vmatpush1.msra.mxu0 0.0
    %1846 = vmatprep.subr.mxu0 0.0
    %1847 = vmatpush1.msra.mxu0 0.0
    %1848 = vmatprep.subr.mxu0 0.0
    %1849 = vmatpush1.msra.mxu0 0.0
    %1850 = vmatprep.subr.mxu0 0.0
    %1851 = vmatpush1.msra.mxu0 0.0
    %1852 = vmatprep.subr.mxu0 0.0
    %v1853 = vand.u32 %v695, 4294901760
    %v1854 = vsub.f32 %v695, %v1853
    %v1855 = vand.u32 %v1854, 4294901760
    %1856 = vmatpush1.msra.mxu0 %v1855
    %1857 = vmatprep.subr.mxu0 0.0
    %v1858 = vand.u32 %v689, 4294901760
    %v1859 = vsub.f32 %v689, %v1858
    %v1860 = vand.u32 %v1859, 4294901760
    %1861 = vmatpush1.msra.mxu0 %v1860
    %1862 = vmatprep.subr.mxu0 0.0
    %v1863 = vand.u32 %v683, 4294901760
    %v1864 = vsub.f32 %v683, %v1863
    %v1865 = vand.u32 %v1864, 4294901760
    %1866 = vmatpush1.msra.mxu0 %v1865
    %1867 = vmatprep.subr.mxu0 0.0
    %v1868 = vand.u32 %v677, 4294901760
    %v1869 = vsub.f32 %v677, %v1868
    %v1870 = vand.u32 %v1869, 4294901760
    %1871 = vmatpush1.msra.mxu0 %v1870
    %1872 = vmatprep.subr.mxu0 0.0
    %v1873 = vand.u32 %v671, 4294901760
    %v1874 = vsub.f32 %v671, %v1873
    %v1875 = vand.u32 %v1874, 4294901760
    %1876 = vmatpush1.msra.mxu0 %v1875
    %1877 = vmatprep.subr.mxu0 0.0
    %1878 = vmatpush2.msra.mxu0 0.0
    %1879 = vmatprep.subr.mxu0 0.0
    %1880 = vmatpush2.msra.mxu0 0.0
    %1881 = vmatprep.subr.mxu0 0.0
    %1882 = vmatpush2.msra.mxu0 0.0
    %1883 = vmatprep.subr.mxu0 0.0
    %1884 = vmatpush2.msra.mxu0 0.0
    %1885 = vmatprep.subr.mxu0 0.0
    %1886 = vmatpush2.msra.mxu0 0.0
    %1887 = vmatprep.subr.mxu0 0.0
    %1888 = vmatpush2.msra.mxu0 0.0
    %1889 = vmatprep.subr.mxu0 0.0
    %1890 = vmatpush2.msra.mxu0 0.0
    %1891 = vmatprep.subr.mxu0 0.0
    %1892 = vmatpush2.msra.mxu0 0.0
    %1893 = vmatprep.subr.mxu0 0.0
    %1894 = vmatpush2.msra.mxu0 0.0
    %1895 = vmatprep.subr.mxu0 0.0
    %1896 = vmatpush2.msra.mxu0 0.0
    %1897 = vmatprep.subr.mxu0 0.0
    %1898 = vmatpush2.msra.mxu0 0.0
    %1899 = vmatprep.subr.mxu0 0.0
    %1900 = vmatpush2.msra.mxu0 0.0
    %1901 = vmatprep.subr.mxu0 0.0
    %1902 = vmatpush2.msra.mxu0 0.0
    %1903 = vmatprep.subr.mxu0 0.0
    %1904 = vmatpush2.msra.mxu0 0.0
    %1905 = vmatprep.subr.mxu0 0.0
    %1906 = vmatpush2.msra.mxu0 0.0
    %1907 = vmatprep.subr.mxu0 0.0
    %1908 = vmatpush2.msra.mxu0 0.0
    %1909 = vmatprep.mubr.f32.mxu0 0.0
    %v1910 = vand.u32 %v1356, 4294901760
    %1911 = vmatmul.mubr.f32.gmra.mxu0 %v1910
    %v1912 = vpop.f32.mrf.mxu0
    %v1913 = vadd.f32 %v1795, %v1912
    %v1914 = vpop.f32.mrf.mxu0
    %1915 = vmatprep.mubr.f32.mxu0 0.0
    %v1916 = vand.u32 %v1359, 4294901760
    %1917 = vmatmul.mubr.f32.gmra.mxu0 %v1916
    %v1918 = vpop.f32.mrf.mxu0
    %v1919 = vadd.f32 %v1803, %v1918
    %v1920 = vpop.f32.mrf.mxu0
    %1921 = vmatprep.mubr.f32.mxu0 0.0
    %v1922 = vand.u32 %v1362, 4294901760
    %1923 = vmatmul.mubr.f32.gmra.mxu0 %v1922
    %v1924 = vpop.f32.mrf.mxu0
    %v1925 = vadd.f32 %v1811, %v1924
    %v1926 = vpop.f32.mrf.mxu0
    %1927 = vmatprep.mubr.f32.mxu0 0.0
    %v1928 = vand.u32 %v1365, 4294901760
    %1929 = vmatmul.mubr.f32.gmra.mxu0 %v1928
    %v1930 = vpop.f32.mrf.mxu0
    %v1931 = vadd.f32 %v1819, %v1930
    %v1932 = vpop.f32.mrf.mxu0
    %1933 = vmatprep.mubr.f32.mxu0 0.0
    %v1934 = vand.u32 %v1368, 4294901760
    %1935 = vmatmul.mubr.f32.gmra.mxu0 %v1934
    %v1936 = vpop.f32.mrf.mxu0
    %v1937 = vadd.f32 %v1827, %v1936
    %v1938 = vpop.f32.mrf.mxu0
    %1939 = vdwg.mxu0
    %1940 = vmatprep.subr.mxu0 0.0
    %1941 = vmatpush1.msra.mxu0 0.0
    %1942 = vmatprep.subr.mxu0 0.0
    %1943 = vmatpush1.msra.mxu0 0.0
    %1944 = vmatprep.subr.mxu0 0.0
    %1945 = vmatpush1.msra.mxu0 0.0
    %1946 = vmatprep.subr.mxu0 0.0
    %1947 = vmatpush1.msra.mxu0 0.0
    %1948 = vmatprep.subr.mxu0 0.0
    %1949 = vmatpush1.msra.mxu0 0.0
    %1950 = vmatprep.subr.mxu0 0.0
    %1951 = vmatpush1.msra.mxu0 0.0
    %1952 = vmatprep.subr.mxu0 0.0
    %1953 = vmatpush1.msra.mxu0 0.0
    %1954 = vmatprep.subr.mxu0 0.0
    %1955 = vmatpush1.msra.mxu0 0.0
    %1956 = vmatprep.subr.mxu0 0.0
    %1957 = vmatpush1.msra.mxu0 0.0
    %1958 = vmatprep.subr.mxu0 0.0
    %1959 = vmatpush1.msra.mxu0 0.0
    %1960 = vmatprep.subr.mxu0 0.0
    %1961 = vmatpush1.msra.mxu0 0.0
    %1962 = vmatprep.subr.mxu0 0.0
    %v1963 = vand.u32 %v695, 4294901760
    %1964 = vmatpush1.msra.mxu0 %v1963
    %1965 = vmatprep.subr.mxu0 0.0
    %v1966 = vand.u32 %v689, 4294901760
    %1967 = vmatpush1.msra.mxu0 %v1966
    %1968 = vmatprep.subr.mxu0 0.0
    %v1969 = vand.u32 %v683, 4294901760
    %1970 = vmatpush1.msra.mxu0 %v1969
    %1971 = vmatprep.subr.mxu0 0.0
    %v1972 = vand.u32 %v677, 4294901760
    %1973 = vmatpush1.msra.mxu0 %v1972
    %1974 = vmatprep.subr.mxu0 0.0
    %v1975 = vand.u32 %v671, 4294901760
    %1976 = vmatpush1.msra.mxu0 %v1975
    %1977 = vmatprep.subr.mxu0 0.0
    %1978 = vmatpush2.msra.mxu0 0.0
    %1979 = vmatprep.subr.mxu0 0.0
    %1980 = vmatpush2.msra.mxu0 0.0
    %1981 = vmatprep.subr.mxu0 0.0
    %1982 = vmatpush2.msra.mxu0 0.0
    %1983 = vmatprep.subr.mxu0 0.0
    %1984 = vmatpush2.msra.mxu0 0.0
    %1985 = vmatprep.subr.mxu0 0.0
    %1986 = vmatpush2.msra.mxu0 0.0
    %1987 = vmatprep.subr.mxu0 0.0
    %1988 = vmatpush2.msra.mxu0 0.0
    %1989 = vmatprep.subr.mxu0 0.0
    %1990 = vmatpush2.msra.mxu0 0.0
    %1991 = vmatprep.subr.mxu0 0.0
    %1992 = vmatpush2.msra.mxu0 0.0
    %1993 = vmatprep.subr.mxu0 0.0
    %1994 = vmatpush2.msra.mxu0 0.0
    %1995 = vmatprep.subr.mxu0 0.0
    %1996 = vmatpush2.msra.mxu0 0.0
    %1997 = vmatprep.subr.mxu0 0.0
    %1998 = vmatpush2.msra.mxu0 0.0
    %1999 = vmatprep.subr.mxu0 0.0
    %2000 = vmatpush2.msra.mxu0 0.0
    %2001 = vmatprep.subr.mxu0 0.0
    %2002 = vmatpush2.msra.mxu0 0.0
    %2003 = vmatprep.subr.mxu0 0.0
    %2004 = vmatpush2.msra.mxu0 0.0
    %2005 = vmatprep.subr.mxu0 0.0
    %2006 = vmatpush2.msra.mxu0 0.0
    %2007 = vmatprep.subr.mxu0 0.0
    %2008 = vmatpush2.msra.mxu0 0.0
    %2009 = vmatprep.mubr.f32.mxu0 0.0
    %v2010 = vand.u32 %v1356, 4294901760
    %2011 = vmatmul.mubr.f32.gmra.mxu0 %v2010
    %v2012 = vpop.f32.mrf.mxu0
    %v2013 = vadd.f32 %v1913, %v2012
    %v2014 = vpop.f32.mrf.mxu0
    %2015 = vmatprep.mubr.f32.mxu0 0.0
    %v2016 = vand.u32 %v1359, 4294901760
    %2017 = vmatmul.mubr.f32.gmra.mxu0 %v2016
    %v2018 = vpop.f32.mrf.mxu0
    %v2019 = vadd.f32 %v1919, %v2018
    %v2020 = vpop.f32.mrf.mxu0
    %2021 = vmatprep.mubr.f32.mxu0 0.0
    %v2022 = vand.u32 %v1362, 4294901760
    %2023 = vmatmul.mubr.f32.gmra.mxu0 %v2022
    %v2024 = vpop.f32.mrf.mxu0
    %v2025 = vadd.f32 %v1925, %v2024
    %v2026 = vpop.f32.mrf.mxu0
    %2027 = vmatprep.mubr.f32.mxu0 0.0
    %v2028 = vand.u32 %v1365, 4294901760
    %2029 = vmatmul.mubr.f32.gmra.mxu0 %v2028
    %v2030 = vpop.f32.mrf.mxu0
    %v2031 = vadd.f32 %v1931, %v2030
    %v2032 = vpop.f32.mrf.mxu0
    %2033 = vmatprep.mubr.f32.mxu0 0.0
    %v2034 = vand.u32 %v1368, 4294901760
    %2035 = vmatmul.mubr.f32.gmra.mxu0 %v2034
    %v2036 = vpop.f32.mrf.mxu0
    %v2037 = vadd.f32 %v1937, %v2036
    %v2038 = vpop.f32.mrf.mxu0
    %2039 = vdwg.mxu0
    %v2040 = vmul.f32 %v2013, %v1322
    %v2041 = vmul.f32 %v2019, %v1328
    %v2042 = vmul.f32 %v2025, %v1334
    %v2043 = vmul.f32 %v2031, %v1340
    %v2044 = vmul.f32 %v2037, %v1346
    %v2045 = vadd.f32 %v2040, %v2041
    %v2046 = vadd.f32 %v2045, %v2042
    %v2047 = vadd.f32 %v2046, %v2043
    %v2048 = vadd.f32 %v2047, %v2044
    %v2049 = vrot.slane %v2048, 4
    %v2050 = vadd.f32 %v2048, %v2049
    %v2051 = vrot.slane %v2050, 2
    %v2052 = vadd.f32 %v2050, %v2051
    %v2053 = vrot.slane %v2052, 1
    %v2054 = vadd.f32 %v2052, %v2053
    %2055 = vst [vmem:[#allocation2] sm:$0x1] %v2054
    // Predicated region
    $region22: #{tpu_custom_call.1} parent=1 // pred_check
      _
    $region23: #{tpu_custom_call.1} parent=1 // pred_check_branch
      %2057 = sbr.rel (0) target = $region25
    $region24: #{tpu_custom_call.1} parent=1 // pred_region
      %s2059 = ssub.s32 16, 16
      %2060 = vsyncadd [#allocation3], %s2059
      %s2062 = sshll.u32 [#allocation2], 4
      %s2063 = int_to_ptr.vmem [resolvable:$true] %s2062
      %2065 = dma.vmem_to_hbm [thread:$0]  %s2063, 16, %s5, [#allocation3]
    $region25: #{tpu_custom_call.1} parent=1 // pred_fallthru
      _
    // Predicated region
    $region26: #{tpu_custom_call.1} parent=1 // pred_check
      _
    $region27: #{tpu_custom_call.1} parent=1 // pred_check_branch
      %2067 = sbr.rel (0) target = $region29
    $region28: #{tpu_custom_call.1} parent=1 // pred_region
      %2068 = dma.done [#allocation3], 16
    $region29: #{tpu_custom_call.1} parent=1 // pred_fallthru
      _
    %2069 = vsyncpa [#allocation3], 1

</llo_original>
